<compile_context>
chip_gen: v6e
topology: v6e:2x2x1
jax: 0.10.0
libtpu: 0.0.40
codegen_flags: <defaults>
</compile_context>

<pallas_src>
import jax
import jax.numpy as jnp
from jax.experimental import pallas as pl
from jax.experimental.pallas import tpu as pltpu


def _round_up(x, m):
    return (x + m - 1) // m * m


def _cdiv(a, b):
    return (a + b - 1) // b


def _make_vq_kernel(n_valid, tile_n, needs_mask):
    def vq_kernel(x_ref, emb_ref, emb2t_ref, e2_ref, q_ref, idx_ref, sse_ref):
        # x_ref:     (T, Dp)  tile of flattened inputs, caller's dtype
        # emb_ref:   (Kp, Dp) zero-padded codebook, f32 (grid-invariant)
        # emb2t_ref: (Dp, Kp) pre-transposed codebook, pre-scaled by 2, f32
        # e2_ref:    (1, Kp)  ||e_k||^2, +1e30 on padded codes
        x = x_ref[...].astype(jnp.float32)          # cast in VMEM only
        e = emb_ref[...]
        e2t = emb2t_ref[...]
        e2 = e2_ref[...]
        T = x.shape[0]
        Kp = e.shape[0]

        # Argmin score: ||e||^2 - 2 x.e (per-row constant ||x||^2 dropped:
        # argmin-invariant).  RHS pre-transposed/pre-scaled in the wrapper ->
        # plain MXU matmul, no relayout, no per-tile (T, Kp) multiply.
        xe2 = jnp.dot(x, e2t, preferred_element_type=jnp.float32)    # (T, Kp)
        score = e2 - xe2

        # First-minimum argmin along the codebook axis (torch.argmin ties ->
        # lowest index).  Padded codes carry score 1e30 so are never chosen.
        kiota = jax.lax.broadcasted_iota(jnp.int32, (T, Kp), 1)
        min_s = jnp.min(score, axis=1, keepdims=True)                # (T, 1)
        idx_col = jnp.min(jnp.where(score <= min_s, kiota, Kp),
                          axis=1, keepdims=True)                     # (T, 1)

        # One-hot @ embeddings, exactly as the PyTorch forward does it.
        onehot = (kiota == idx_col).astype(jnp.float32)              # (T, Kp)
        quant = jnp.dot(onehot, e,
                        preferred_element_type=jnp.float32)          # (T, Dp)
        q_ref[...] = quant.astype(q_ref.dtype)

        # Lane-dense index row: contract the one-hot with a [0..Kp) iota on
        # the MXU ('zk,tk->zt').  Exact while Kp - 1 < 2^24 (asserted in the
        # wrapper): one 1.0 per row times small integers.
        kvals = jax.lax.broadcasted_iota(
            jnp.int32, (1, Kp), 1).astype(jnp.float32)               # (1, Kp)
        idx_row = jax.lax.dot_general(
            kvals, onehot, (((1,), (1,)), ((), ())),
            preferred_element_type=jnp.float32)                      # (1, T)
        idx_ref[...] = idx_row.astype(jnp.int32).reshape(1, 1, T)

        # Per-tile SSE partial: exact ||quantized - x||^2 reduced only over
        # rows -> lane-dense (1, Dp) store; rows past N are masked (handles
        # the ragged last block without any HBM-side padding pass).
        diff = quant - x
        sq = diff * diff
        if needs_mask:
            row = (pl.program_id(0) * tile_n
                   + jax.lax.broadcasted_iota(jnp.int32, (T, 1), 0))
            sq = jnp.where(row < n_valid, sq, 0.0)
        sse_ref[...] = jnp.sum(sq, axis=0, keepdims=True).reshape(1, 1, -1)

    return vq_kernel


def vector_quantizer(inputs, embeddings, commitment_cost, tile_n=1024):
    """Pallas VectorQuantizer forward.

    inputs:     (..., D) float array (channels-last, D == embedding_dim)
    embeddings: (K, D) float codebook
    Returns (quantized, loss, encoding_indices) matching the PyTorch module's
    forward values (indices are int32 of shape (N, 1)).
    """
    K, D = embeddings.shape
    assert K < (1 << 24), "index-row MXU contraction is f32-exact only for K < 2^24"
    orig_shape = inputs.shape
    # Caller dtype flows straight through the BlockSpec: no f32 copy in HBM.
    flat = inputs.reshape(-1, D)
    N = flat.shape[0]

    # Pad the feature axis to a lane multiple so x/quantized tiles are
    # lane-dense (unmasked vst).  No-op when D % 128 == 0 (the common case).
    d_pad = _round_up(D, 128)
    if d_pad != D:
        flat = jnp.pad(flat, ((0, 0), (0, d_pad - D)))

    # Pad the codebook axis to a lane multiple: full-lane (T, Kp) vregs and
    # full MXU output tiles.  Padded codes get zero embeddings and +1e30
    # squared norm so the argmin can never select them.
    k_pad = _round_up(K, 128)
    emb = jnp.zeros((k_pad, d_pad), jnp.float32).at[:K, :D].set(
        embeddings.astype(jnp.float32))
    e2 = jnp.sum(emb * emb, axis=1)
    e2 = jnp.where(jnp.arange(k_pad) < K, e2, 1e30)[None, :]         # (1, Kp)
    emb2_t = (2.0 * emb).T                                           # (Dp, Kp)

    # Tile sizing: large lane-aligned tiles (mem-bound kernel, ~0.35 us/step
    # overhead), but keep >= 2 grid steps when N allows so both v7x
    # TensorCores get work under dimension_semantics=("parallel",).
    tile_n = max(128, min(_round_up(tile_n, 128), _round_up(N, 128)))
    if N > 256:
        tile_n = min(tile_n, max(128, _round_up(_cdiv(N, 2), 128)))
    nt = _cdiv(N, tile_n)
    needs_mask = (N % tile_n) != 0

    # Scoped-VMEM request: ~2x the real tile footprint, small floor, capped
    # below v7x's 64 MiB physical VMEM.
    in_bytes = jnp.dtype(flat.dtype).itemsize
    out_bytes = jnp.dtype(inputs.dtype).itemsize
    est = (2 * tile_n * d_pad * (in_bytes + out_bytes)      # x / quant, dbl-buffered
           + 2 * (2 * k_pad * d_pad + k_pad) * 4            # resident codebook copies
           + 2 * (tile_n + d_pad) * 4                       # idx / sse out blocks
           + 6 * tile_n * k_pad * 4                         # (T, Kp) temporaries
           + 4 * tile_n * d_pad * 4)                        # (T, Dp) temporaries
    vmem_limit = int(min(48 * 1024 * 1024, max(8 * 1024 * 1024, 2 * est)))

    kernel = _make_vq_kernel(N, tile_n, needs_mask)

    quant_flat, idx_rows, sse_parts = pl.pallas_call(
        kernel,
        grid=(nt,),
        in_specs=[
            pl.BlockSpec((tile_n, d_pad), lambda i: (i, 0)),
            pl.BlockSpec((k_pad, d_pad), lambda i: (0, 0)),
            pl.BlockSpec((d_pad, k_pad), lambda i: (0, 0)),
            pl.BlockSpec((1, k_pad), lambda i: (0, 0)),
        ],
        out_specs=[
            pl.BlockSpec((tile_n, d_pad), lambda i: (i, 0)),
            pl.BlockSpec((1, 1, tile_n), lambda i: (i, 0, 0)),
            pl.BlockSpec((1, 1, d_pad), lambda i: (i, 0, 0)),
        ],
        out_shape=[
            jax.ShapeDtypeStruct((N, d_pad), inputs.dtype),
            jax.ShapeDtypeStruct((nt, 1, tile_n), jnp.int32),
            jax.ShapeDtypeStruct((nt, 1, d_pad), jnp.float32),
        ],
        compiler_params=pltpu.CompilerParams(
            dimension_semantics=("parallel",),
            vmem_limit_bytes=vmem_limit),
    )(flat, emb, emb2_t, e2)

    sse = jnp.sum(sse_parts)
    mse = sse / (N * D)
    # q_latent_loss + commitment_cost * e_latent_loss; both equal mse forward.
    loss = (1.0 + commitment_cost) * mse
    # Straight-through estimator: forward value is just `quantized`.
    quantized = quant_flat[:, :D].reshape(orig_shape)
    indices = idx_rows.reshape(-1)[:N].reshape(N, 1)
    return quantized, loss, indices


if __name__ == "__main__":
    # Module hyper-params (deterministic, synthetic).
    num_embeddings = 64
    embedding_dim = 128          # multiple of 128 -> lane-dense tiles
    commitment_cost = 0.25

    key = jax.random.PRNGKey(0)
    k_emb, k_x = jax.random.split(key)

    # nn.Embedding(num_embeddings, embedding_dim) with uniform(-1/K, 1/K) init.
    embeddings = jax.random.uniform(
        k_emb, (num_embeddings, embedding_dim), dtype=jnp.float32,
        minval=-1.0 / num_embeddings, maxval=1.0 / num_embeddings)

    # Small channels-last input: batch=4, spatial=10x10, channels=embedding_dim.
    # N = 400 positions: with the >=2-step clamp this runs nt=2 tiles of 256,
    # exercising both the multi-tile grid AND the ragged-last-block masking.
    x = jax.random.normal(k_x, (4, 10, 10, embedding_dim), dtype=jnp.float32)

    quantized, loss, indices = vector_quantizer(x, embeddings, commitment_cost)
    jax.block_until_ready((quantized, loss, indices))

    # Pure-JAX reference check (exact distance formula, like the PyTorch code).
    flat = x.reshape(-1, embedding_dim)
    d_ref = jnp.sum((flat[:, None, :] - embeddings[None, :, :]) ** 2, axis=2)
    idx_ref = jnp.argmin(d_ref, axis=1)
    q_ref = embeddings[idx_ref].reshape(x.shape)
    mse_ref = jnp.mean((q_ref - x) ** 2)
    loss_ref = (1.0 + commitment_cost) * mse_ref

    assert quantized.shape == x.shape and quantized.dtype == x.dtype
    assert indices.shape == (flat.shape[0], 1)
    assert jnp.array_equal(indices[:, 0], idx_ref.astype(jnp.int32))
    assert jnp.allclose(quantized, q_ref, atol=1e-5)
    assert jnp.allclose(loss, loss_ref, atol=1e-5)

    print("KERNEL_OK")
</pallas_src>

<mosaic_0001>
module attributes {stable_mosaic.version = 11 : i64} {
  func.func @vq_kernel(%arg0: i32, %arg1: memref<256x128xf32, #tpu.memory_space<vmem>>, %arg2: memref<128x128xf32, #tpu.memory_space<vmem>>, %arg3: memref<128x128xf32, #tpu.memory_space<vmem>>, %arg4: memref<1x128xf32, #tpu.memory_space<vmem>>, %arg5: memref<256x128xf32, #tpu.memory_space<vmem>>, %arg6: memref<1x1x256xi32, #tpu.memory_space<vmem>>, %arg7: memref<1x1x128xf32, #tpu.memory_space<vmem>>) attributes {dimension_semantics = [#tpu.dimension_semantics<parallel>], iteration_bounds = array<i64: 2>, scalar_prefetch = 0 : i64, scratch_operands = 0 : i64, tpu.core_type = #tpu.core_type<tc>, window_params = [{transform_indices = @transform_0, window_bounds = array<i64: 256, 128>}, {pipeline_mode = #tpu.pipeline_mode<synchronous>, transform_indices = @transform_1, window_bounds = array<i64: 128, 128>}, {pipeline_mode = #tpu.pipeline_mode<synchronous>, transform_indices = @transform_2, window_bounds = array<i64: 128, 128>}, {pipeline_mode = #tpu.pipeline_mode<synchronous>, transform_indices = @transform_3, window_bounds = array<i64: 1, 128>}, {transform_indices = @transform_4, window_bounds = array<i64: 256, 128>}, {transform_indices = @transform_5, window_bounds = array<i64: 1, 1, 256>}, {transform_indices = @transform_6, window_bounds = array<i64: 1, 1, 128>}]} {
    %c0 = arith.constant 0 : index
    %c0_0 = arith.constant 0 : index
    %0 = vector.load %arg1[%c0, %c0_0] : memref<256x128xf32, #tpu.memory_space<vmem>>, vector<256x128xf32>
    %c0_1 = arith.constant 0 : index
    %c0_2 = arith.constant 0 : index
    %1 = vector.load %arg2[%c0_1, %c0_2] : memref<128x128xf32, #tpu.memory_space<vmem>>, vector<128x128xf32>
    %c0_3 = arith.constant 0 : index
    %c0_4 = arith.constant 0 : index
    %2 = vector.load %arg3[%c0_3, %c0_4] : memref<128x128xf32, #tpu.memory_space<vmem>>, vector<128x128xf32>
    %c0_5 = arith.constant 0 : index
    %c0_6 = arith.constant 0 : index
    %3 = vector.load %arg4[%c0_5, %c0_6] : memref<1x128xf32, #tpu.memory_space<vmem>>, vector<1x128xf32>
    %cst = arith.constant dense<0.000000e+00> : vector<256x128xf32>
    %4 = tpu.matmul %0, %2, %cst {dimension_numbers = #tpu.dot_dimension_numbers<[1], [0], [0], [1], [0, 0, 1, 1], [], []>} : vector<256x128xf32>, vector<128x128xf32>, vector<256x128xf32> -> vector<256x128xf32>
    %5 = vector.broadcast %3 : vector<1x128xf32> to vector<256x128xf32>
    %6 = arith.subf %5, %4 : vector<256x128xf32>
    %7 = tpu.iota {dimensions = array<i32: 1>} : vector<256x128xi32>
    %cst_7 = arith.constant dense<0x7F800000> : vector<256xf32>
    %8 = vector.multi_reduction <minimumf>, %6, %cst_7 [1] : vector<256x128xf32> to vector<256xf32>
    %9 = vector.shape_cast %8 : vector<256xf32> to vector<256x1xf32>
    %10 = vector.broadcast %9 : vector<256x1xf32> to vector<256x128xf32>
    %11 = arith.cmpf ole, %6, %10 : vector<256x128xf32>
    %c128_i32 = arith.constant 128 : i32
    %12 = vector.broadcast %c128_i32 : i32 to vector<256x128xi32>
    %13 = arith.select %11, %7, %12 : vector<256x128xi1>, vector<256x128xi32>
    %cst_8 = arith.constant dense<2147483647> : vector<256xi32>
    %14 = vector.multi_reduction <minsi>, %13, %cst_8 [1] : vector<256x128xi32> to vector<256xi32>
    %15 = vector.shape_cast %14 : vector<256xi32> to vector<256x1xi32>
    %16 = vector.broadcast %15 : vector<256x1xi32> to vector<256x128xi32>
    %17 = arith.cmpi eq, %7, %16 : vector<256x128xi32>
    %18 = arith.extui %17 : vector<256x128xi1> to vector<256x128xi32>
    %19 = arith.sitofp %18 : vector<256x128xi32> to vector<256x128xf32>
    %cst_9 = arith.constant dense<0.000000e+00> : vector<256x128xf32>
    %20 = tpu.matmul %19, %1, %cst_9 {dimension_numbers = #tpu.dot_dimension_numbers<[1], [0], [0], [1], [0, 0, 1, 1], [], []>} : vector<256x128xf32>, vector<128x128xf32>, vector<256x128xf32> -> vector<256x128xf32>
    %c0_10 = arith.constant 0 : index
    %c0_11 = arith.constant 0 : index
    %21 = vector.load %arg5[%c0_10, %c0_11] : memref<256x128xf32, #tpu.memory_space<vmem>>, vector<256x128xf32>
    tpu.vector_store %arg5[%c0_10, %c0_11], %20 {strides = array<i32>} : memref<256x128xf32, #tpu.memory_space<vmem>>, vector<256x128xf32>,
    %22 = tpu.iota {dimensions = array<i32: 1>} : vector<1x128xi32>
    %23 = arith.sitofp %22 : vector<1x128xi32> to vector<1x128xf32>
    %cst_12 = arith.constant dense<0.000000e+00> : vector<1x256xf32>
    %24 = tpu.matmul %23, %19, %cst_12 {dimension_numbers = #tpu.dot_dimension_numbers<[1], [1], [0], [0], [0, 0, 1, 0], [], []>} : vector<1x128xf32>, vector<256x128xf32>, vector<1x256xf32> -> vector<1x256xf32>
    %25 = arith.fptosi %24 : vector<1x256xf32> to vector<1x256xi32>
    %26 = vector.shape_cast %25 : vector<1x256xi32> to vector<1x1x256xi32>
    %c0_13 = arith.constant 0 : index
    %c0_14 = arith.constant 0 : index
    %c0_15 = arith.constant 0 : index
    %27 = vector.load %arg6[%c0_13, %c0_14, %c0_15] : memref<1x1x256xi32, #tpu.memory_space<vmem>>, vector<1x1x256xi32>
    tpu.vector_store %arg6[%c0_13, %c0_14, %c0_15], %26 {strides = array<i32>} : memref<1x1x256xi32, #tpu.memory_space<vmem>>, vector<1x1x256xi32>,
    %28 = arith.subf %20, %0 : vector<256x128xf32>
    %29 = arith.mulf %28, %28 : vector<256x128xf32>
    %c256_i32 = arith.constant 256 : i32
    %30 = arith.muli %arg0, %c256_i32 : i32
    %31 = tpu.iota {dimensions = array<i32: 0>} : vector<256x1xi32>
    %32 = vector.broadcast %30 : i32 to vector<256x1xi32>
    %33 = arith.addi %32, %31 : vector<256x1xi32>
    %c400_i32 = arith.constant 400 : i32
    %34 = vector.broadcast %c400_i32 : i32 to vector<256x1xi32>
    %35 = arith.cmpi slt, %33, %34 : vector<256x1xi32>
    %cst_16 = arith.constant 0.000000e+00 : f32
    %36 = vector.shape_cast %35 : vector<256x1xi1> to vector<256x1xi1>
    %37 = vector.broadcast %36 : vector<256x1xi1> to vector<256x128xi1>
    %38 = vector.broadcast %cst_16 : f32 to vector<256x128xf32>
    %39 = arith.select %37, %29, %38 : vector<256x128xi1>, vector<256x128xf32>
    %cst_17 = arith.constant dense<0.000000e+00> : vector<128xf32>
    %40 = vector.multi_reduction <add>, %39, %cst_17 [0] : vector<256x128xf32> to vector<128xf32>
    %41 = vector.shape_cast %40 : vector<128xf32> to vector<1x128xf32>
    %42 = vector.shape_cast %41 : vector<1x128xf32> to vector<1x1x128xf32>
    %c0_18 = arith.constant 0 : index
    %c0_19 = arith.constant 0 : index
    %c0_20 = arith.constant 0 : index
    %43 = vector.load %arg7[%c0_18, %c0_19, %c0_20] : memref<1x1x128xf32, #tpu.memory_space<vmem>>, vector<1x1x128xf32>
    tpu.vector_store %arg7[%c0_18, %c0_19, %c0_20], %42 {strides = array<i32>} : memref<1x1x128xf32, #tpu.memory_space<vmem>>, vector<1x1x128xf32>,
    return
  }
  func.func @transform_0(%arg0: i32) -> (i32, i32) {
    %c0_i32 = arith.constant 0 : i32
    %c0_i32_0 = arith.constant 0 : i32
    return %arg0, %c0_i32 : i32, i32
  }
  func.func @transform_1(%arg0: i32) -> (i32, i32) {
    %c0_i32 = arith.constant 0 : i32
    %c0_i32_0 = arith.constant 0 : i32
    %c0_i32_1 = arith.constant 0 : i32
    return %c0_i32, %c0_i32_0 : i32, i32
  }
  func.func @transform_2(%arg0: i32) -> (i32, i32) {
    %c0_i32 = arith.constant 0 : i32
    %c0_i32_0 = arith.constant 0 : i32
    %c0_i32_1 = arith.constant 0 : i32
    return %c0_i32, %c0_i32_0 : i32, i32
  }
  func.func @transform_3(%arg0: i32) -> (i32, i32) {
    %c0_i32 = arith.constant 0 : i32
    %c0_i32_0 = arith.constant 0 : i32
    %c0_i32_1 = arith.constant 0 : i32
    return %c0_i32, %c0_i32_0 : i32, i32
  }
  func.func @transform_4(%arg0: i32) -> (i32, i32) {
    %c0_i32 = arith.constant 0 : i32
    %c0_i32_0 = arith.constant 0 : i32
    return %arg0, %c0_i32 : i32, i32
  }
  func.func @transform_5(%arg0: i32) -> (i32, i32, i32) {
    %c0_i32 = arith.constant 0 : i32
    %c0_i32_0 = arith.constant 0 : i32
    %c0_i32_1 = arith.constant 0 : i32
    return %arg0, %c0_i32, %c0_i32_0 : i32, i32, i32
  }
  func.func @transform_6(%arg0: i32) -> (i32, i32, i32) {
    %c0_i32 = arith.constant 0 : i32
    %c0_i32_0 = arith.constant 0 : i32
    %c0_i32_1 = arith.constant 0 : i32
    return %arg0, %c0_i32, %c0_i32_0 : i32, i32, i32
  }
}

</mosaic_0001>

<llo_original>
// kernel: tpu_custom_call.1
$region0: #{tpu_custom_call.1}
  #allocation0 [shape = 'u32[]', space=smem, size = 0x4, offset = 0x4, fixed_abs, tag = 'smem constant byte address 0x4 - core index']
  #allocation1 [shape = 'u32[144,128]{1,0:T(1,128)}', space=vmem, size = 0x12000, scoped, tag = 'internal scratch']
  %s0 = inlined_call_operand.hbm [shape: f32[400,128], index: 0, kind: input, shape index: {}]
  %s1 = inlined_call_operand.hbm [shape: f32[128,128], index: 1, kind: input, shape index: {}]
  %s2 = inlined_call_operand.hbm [shape: f32[128,128], index: 2, kind: input, shape index: {}]
  %s3 = inlined_call_operand.vmem [shape: f32[1,128], index: 3, kind: input, shape index: {}]
  %s4 = inlined_call_operand.hbm [shape: f32[400,128], index: 4, kind: output, shape index: {0}]
  %s5 = inlined_call_operand.hbm [shape: s32[2,1,256], index: 5, kind: output, shape index: {1}]
  %s6 = inlined_call_operand.hbm [shape: f32[2,1,128], index: 6, kind: output, shape index: {2}]
  %7 = xla_tuple %s4, %s5, %s6
  %s8 = sld [smem:[#allocation0]]
  $region77: #{tpu_custom_call.1} parent=0
    _
  %s10 = ssub.s32 1, %s8
  %s11 = scalar_select 0, %s10, %s8
  $region1: #{tpu_custom_call.1} parent=0
    #allocation2 [shape = 'u8[262144]{0}', space=vmem, size = 0x40000, scoped, tag = 'input window, operand 0']
    #allocation3 [shape = 's32[2]{0}', space=sflag, size = 0x8, scoped, tag = 'scoped memory for tpu_custom_call.1']
    #allocation4 [shape = 's32[2]{0}', space=sflag, size = 0x8, scoped, tag = 'scoped memory for tpu_custom_call.1']
    #allocation5 [shape = 'u8[65536]{0}', space=vmem, size = 0x10000, scoped, tag = 'input window, operand 1, single buffered']
    #allocation6 [shape = 's32[1]{0}', space=sflag, size = 0x4, scoped, tag = 'scoped memory for tpu_custom_call.1']
    #allocation7 [shape = 'u8[65536]{0}', space=vmem, size = 0x10000, scoped, tag = 'input window, operand 2, single buffered']
    #allocation8 [shape = 'u8[262144]{0}', space=vmem, size = 0x40000, scoped, tag = 'output window, operand 0']
    #allocation9 [shape = 'u8[2048]{0}', space=vmem, size = 0x800, scoped, tag = 'output window, operand 1']
    #allocation10 [shape = 's32[2]{0}', space=sflag, size = 0x8, scoped, tag = 'scoped memory for tpu_custom_call.1']
    #allocation11 [shape = 'u8[1024]{0}', space=vmem, size = 0x400, scoped, tag = 'output window, operand 2']
    %12 = vsyncpa [#allocation3], 0
    %s13 = scalar_lea.sflag [#allocation3], 1
    %14 = vsyncpa %s13, 0
    %15 = vsyncpa [#allocation6], 0
    %16 = vsyncpa [#allocation4], 0
    %s17 = scalar_lea.sflag [#allocation4], 1
    %18 = vsyncpa %s17, 0
    %19 = vsyncpa [#allocation10], 0
    %s20 = scalar_lea.sflag [#allocation10], 1
    %21 = vsyncpa %s20, 0
    loop: start=0, step=1, limit=4
    $region2: #{tpu_custom_call.1} parent=1 // loop_pre_header
      _
    $region3: #{tpu_custom_call.1} parent=1 // loop_header
      %s23 = sphi 0, %s27
      %p24 = scmp.ge.s32.totalorder %s23, 4
      %s33 = sphi 0, %s35
      %s36 = sphi 0, %s33
      %s37 = sphi 0, %s36
      %s53 = sphi 0, %s37
      %s57 = sphi 0, %s57
      %s59 = sphi 0, %s57
      %s60 = sphi 0, %s59
      %s74 = sphi 0, %s60
      %s78 = sphi 0, %s78
      %s80 = sphi 0, %s78
      %s81 = sphi 0, %s80
      %s95 = sphi 0, %s81
      %s99 = sphi 0, %s99
      %s101 = sphi 0, %s99
      %s102 = sphi 0, %s101
      %s116 = sphi 0, %s102
      %s122 = sphi 0, %s124
      %s125 = sphi 0, %s122
      %s126 = sphi 0, %s125
      %s142 = sphi 0, %s126
      %s148 = sphi 0, %s150
      %s151 = sphi 0, %s148
      %s152 = sphi 0, %s151
      %s168 = sphi 0, %s152
      %s174 = sphi 0, %s176
      %s177 = sphi 0, %s174
      %s178 = sphi 0, %s177
      %s194 = sphi 0, %s178
    $region4: #{tpu_custom_call.1} parent=1 // loop_header_branch
      %26 = sbr.rel (%p24) target = $region8
    $region5: #{tpu_custom_call.1} parent=1 // loop_body
      %s28 = ssub.s32 %s23, 1
      %s29 = ssub.s32 %s23, 2
      %s30 = sadd.s32 %s23, 1
      %s31 = ssub.s32 %s23, %s30
      %p32 = scmp.eq.s32.totalorder %s31, 0
      %s34 = sadd.s32 %s33, 1
      %s35 = scalar_select %p32, %s33, %s34
      %p38 = pneg %p32
      %p39 = scmp.eq.s32.totalorder %s23, 1
      %p40 = por %p38, %p39
      %p41 = scmp.ne.s32.totalorder %s33, %s36
      %p42 = scmp.eq.s32.totalorder %s23, 0
      %p43 = por %p41, %p42
      %p44 = scmp.ne.s32.totalorder %s33, %s36
      %p45 = scmp.eq.s32.totalorder %s28, 1
      %p46 = por %p44, %p45
      %p47 = scmp.ne.s32.totalorder %s36, %s37
      %p48 = scmp.eq.s32.totalorder %s28, 0
      %p49 = por %p47, %p48
      %p50 = scmp.ne.s32.totalorder %s36, %s37
      %p51 = scmp.eq.s32.totalorder %s29, 1
      %p52 = por %p50, %p51
      %p54 = scmp.ne.s32.totalorder %s37, %s53
      %p55 = scmp.eq.s32.totalorder %s29, 0
      %p56 = por %p54, %p55
      %s58 = sadd.s32 %s57, 1
      %p61 = scmp.eq.s32.totalorder %s23, 1
      %p62 = scmp.ne.s32.totalorder %s57, %s59
      %p63 = scmp.eq.s32.totalorder %s23, 0
      %p64 = por %p62, %p63
      %p65 = scmp.ne.s32.totalorder %s57, %s59
      %p66 = scmp.eq.s32.totalorder %s28, 1
      %p67 = por %p65, %p66
      %p68 = scmp.ne.s32.totalorder %s59, %s60
      %p69 = scmp.eq.s32.totalorder %s28, 0
      %p70 = por %p68, %p69
      %p71 = scmp.ne.s32.totalorder %s59, %s60
      %p72 = scmp.eq.s32.totalorder %s29, 1
      %p73 = por %p71, %p72
      %p75 = scmp.ne.s32.totalorder %s60, %s74
      %p76 = scmp.eq.s32.totalorder %s29, 0
      %p77 = por %p75, %p76
      %s79 = sadd.s32 %s78, 1
      %p82 = scmp.eq.s32.totalorder %s23, 1
      %p83 = scmp.ne.s32.totalorder %s78, %s80
      %p84 = scmp.eq.s32.totalorder %s23, 0
      %p85 = por %p83, %p84
      %p86 = scmp.ne.s32.totalorder %s78, %s80
      %p87 = scmp.eq.s32.totalorder %s28, 1
      %p88 = por %p86, %p87
      %p89 = scmp.ne.s32.totalorder %s80, %s81
      %p90 = scmp.eq.s32.totalorder %s28, 0
      %p91 = por %p89, %p90
      %p92 = scmp.ne.s32.totalorder %s80, %s81
      %p93 = scmp.eq.s32.totalorder %s29, 1
      %p94 = por %p92, %p93
      %p96 = scmp.ne.s32.totalorder %s81, %s95
      %p97 = scmp.eq.s32.totalorder %s29, 0
      %p98 = por %p96, %p97
      %s100 = sadd.s32 %s99, 1
      %p103 = scmp.eq.s32.totalorder %s23, 1
      %p104 = scmp.ne.s32.totalorder %s99, %s101
      %p105 = scmp.eq.s32.totalorder %s23, 0
      %p106 = por %p104, %p105
      %p107 = scmp.ne.s32.totalorder %s99, %s101
      %p108 = scmp.eq.s32.totalorder %s28, 1
      %p109 = por %p107, %p108
      %p110 = scmp.ne.s32.totalorder %s101, %s102
      %p111 = scmp.eq.s32.totalorder %s28, 0
      %p112 = por %p110, %p111
      %p113 = scmp.ne.s32.totalorder %s101, %s102
      %p114 = scmp.eq.s32.totalorder %s29, 1
      %p115 = por %p113, %p114
      %p117 = scmp.ne.s32.totalorder %s102, %s116
      %p118 = scmp.eq.s32.totalorder %s29, 0
      %p119 = por %p117, %p118
      %s120 = ssub.s32 %s23, %s30
      %p121 = scmp.eq.s32.totalorder %s120, 0
      %s123 = sadd.s32 %s122, 1
      %s124 = scalar_select %p121, %s122, %s123
      %p127 = pneg %p121
      %p128 = scmp.eq.s32.totalorder %s23, 1
      %p129 = por %p127, %p128
      %p130 = scmp.ne.s32.totalorder %s122, %s125
      %p131 = scmp.eq.s32.totalorder %s23, 0
      %p132 = por %p130, %p131
      %p133 = scmp.ne.s32.totalorder %s122, %s125
      %p134 = scmp.eq.s32.totalorder %s28, 1
      %p135 = por %p133, %p134
      %p136 = scmp.ne.s32.totalorder %s125, %s126
      %p137 = scmp.eq.s32.totalorder %s28, 0
      %p138 = por %p136, %p137
      %p139 = scmp.ne.s32.totalorder %s125, %s126
      %p140 = scmp.eq.s32.totalorder %s29, 1
      %p141 = por %p139, %p140
      %p143 = scmp.ne.s32.totalorder %s126, %s142
      %p144 = scmp.eq.s32.totalorder %s29, 0
      %p145 = por %p143, %p144
      %s146 = ssub.s32 %s23, %s30
      %p147 = scmp.eq.s32.totalorder %s146, 0
      %s149 = sadd.s32 %s148, 1
      %s150 = scalar_select %p147, %s148, %s149
      %p153 = pneg %p147
      %p154 = scmp.eq.s32.totalorder %s23, 1
      %p155 = por %p153, %p154
      %p156 = scmp.ne.s32.totalorder %s148, %s151
      %p157 = scmp.eq.s32.totalorder %s23, 0
      %p158 = por %p156, %p157
      %p159 = scmp.ne.s32.totalorder %s148, %s151
      %p160 = scmp.eq.s32.totalorder %s28, 1
      %p161 = por %p159, %p160
      %p162 = scmp.ne.s32.totalorder %s151, %s152
      %p163 = scmp.eq.s32.totalorder %s28, 0
      %p164 = por %p162, %p163
      %p165 = scmp.ne.s32.totalorder %s151, %s152
      %p166 = scmp.eq.s32.totalorder %s29, 1
      %p167 = por %p165, %p166
      %p169 = scmp.ne.s32.totalorder %s152, %s168
      %p170 = scmp.eq.s32.totalorder %s29, 0
      %p171 = por %p169, %p170
      %s172 = ssub.s32 %s23, %s30
      %p173 = scmp.eq.s32.totalorder %s172, 0
      %s175 = sadd.s32 %s174, 1
      %s176 = scalar_select %p173, %s174, %s175
      %p179 = pneg %p173
      %p180 = scmp.eq.s32.totalorder %s23, 1
      %p181 = por %p179, %p180
      %p182 = scmp.ne.s32.totalorder %s174, %s177
      %p183 = scmp.eq.s32.totalorder %s23, 0
      %p184 = por %p182, %p183
      %p185 = scmp.ne.s32.totalorder %s174, %s177
      %p186 = scmp.eq.s32.totalorder %s28, 1
      %p187 = por %p185, %p186
      %p188 = scmp.ne.s32.totalorder %s177, %s178
      %p189 = scmp.eq.s32.totalorder %s28, 0
      %p190 = por %p188, %p189
      %p191 = scmp.ne.s32.totalorder %s177, %s178
      %p192 = scmp.eq.s32.totalorder %s29, 1
      %p193 = por %p191, %p192
      %p195 = scmp.ne.s32.totalorder %s178, %s194
      %p196 = scmp.eq.s32.totalorder %s29, 0
      %p197 = por %p195, %p196
      %p198 = scmp.le.s32.totalorder 1, %s23
      %p199 = scmp.lt.s32.totalorder %s23, 3
      %p200 = pnand %p198, %p199
      %p201 = pneg %p200
      // Predicated region
      $region9: #{tpu_custom_call.1} parent=5 // pred_check
        _
      $region10: #{tpu_custom_call.1} parent=5 // pred_check_branch
        %203 = sbr.rel (%p200) target = $region12
      $region11: #{tpu_custom_call.1} parent=5 // pred_region
        %s204 = ssub.s32 %s23, 1
        // Predicated region
        $region13: #{tpu_custom_call.1} parent=11 // pred_check
          %p205 = pneg %p70
        $region14: #{tpu_custom_call.1} parent=11 // pred_check_branch
          %207 = sbr.rel (%p205) target = $region16
        $region15: #{tpu_custom_call.1} parent=11 // pred_region
          %s209 = ssub.s32 2048, 2048
          %210 = vsyncadd [#allocation6], %s209
          %s211 = sshll.u32 [#allocation5], 4
          %s212 = int_to_ptr.vmem [resolvable:$true] %s211
          %217 = dma.hbm_to_vmem [thread:$0]  %s1, 2048, %s212, [#allocation6], 128, 128, 8
        $region16: #{tpu_custom_call.1} parent=11 // pred_fallthru
          _
        // Predicated region
        $region17: #{tpu_custom_call.1} parent=11 // pred_check
          %p218 = pneg %p91
        $region18: #{tpu_custom_call.1} parent=11 // pred_check_branch
          %220 = sbr.rel (%p218) target = $region20
        $region19: #{tpu_custom_call.1} parent=11 // pred_region
          %s222 = ssub.s32 2048, 2048
          %223 = vsyncadd [#allocation6], %s222
          %s224 = sshll.u32 [#allocation7], 4
          %s225 = int_to_ptr.vmem [resolvable:$true] %s224
          %230 = dma.hbm_to_vmem [thread:$0]  %s2, 2048, %s225, [#allocation6], 128, 128, 8
        $region20: #{tpu_custom_call.1} parent=11 // pred_fallthru
          _
        // Predicated region
        $region21: #{tpu_custom_call.1} parent=11 // pred_check
          %p231 = pneg %p112
        $region22: #{tpu_custom_call.1} parent=11 // pred_check_branch
          %233 = sbr.rel (%p231) target = $region24
        $region23: #{tpu_custom_call.1} parent=11 // pred_region
          _
        $region24: #{tpu_custom_call.1} parent=11 // pred_fallthru
          _
      $region12: #{tpu_custom_call.1} parent=5 // pred_fallthru
        _
      %p234 = scmp.lt.s32.totalorder %s23, 2
      // Predicated region
      $region25: #{tpu_custom_call.1} parent=5 // pred_check
        %p235 = pneg %p234
      $region26: #{tpu_custom_call.1} parent=5 // pred_check_branch
        %237 = sbr.rel (%p235) target = $region28
      $region27: #{tpu_custom_call.1} parent=5 // pred_region
        // Predicated region
        $region29: #{tpu_custom_call.1} parent=27 // pred_check
          %p238 = pneg %p43
        $region30: #{tpu_custom_call.1} parent=27 // pred_check_branch
          %240 = sbr.rel (%p238) target = $region32
        $region31: #{tpu_custom_call.1} parent=27 // pred_region
          %s241 = sand.u32 %s33, 1
          %s242 = scalar_lea.sflag [#allocation3], %s241
          %s243 = sand.u32 %s33, 1
          %s244 = smul.addr %s243, 256
          %s245 = scalar_lea.vmem [#allocation2], %s244
          %s246 = smul.u32 32, %s23
          %s247 = ssub.s32 50, %s246
          %p248 = scmp.lt.s32.totalorder %s247, 32
          %s249 = scalar_select %p248, %s247, 32
          %s250 = smul.u32 128, %s249
          %s252 = ssub.s32 4096, %s250
          %253 = vsyncadd %s242, %s252
          %p254 = scmp.ne.s32.totalorder 0, %s250
          %s255 = smul.addr %s246, 128
          %s256 = scalar_lea.hbm %s0, %s255
          %s257 = smul.u32 8, %s249
          %s258 = sshll.u32 %s245, 4
          %s259 = int_to_ptr.vmem [resolvable:$true] %s258
          %s260 = sshll.u32 %s257, 4
          %264 = dma.hbm_to_vmem [thread:$0]  (%p254), %s256, %s260, %s259, %s242, 128, 128, 8
        $region32: #{tpu_custom_call.1} parent=27 // pred_fallthru
          _
      $region28: #{tpu_custom_call.1} parent=5 // pred_fallthru
        _
      %p265 = scmp.le.s32.totalorder 1, %s23
      %p266 = scmp.lt.s32.totalorder %s23, 3
      %p267 = pnand %p265, %p266
      %p268 = pneg %p267
      // Predicated region
      $region33: #{tpu_custom_call.1} parent=5 // pred_check
        _
      $region34: #{tpu_custom_call.1} parent=5 // pred_check_branch
        %270 = sbr.rel (%p267) target = $region36
      $region35: #{tpu_custom_call.1} parent=5 // pred_region
        %s271 = ssub.s32 %s23, 1
        %s272 = sand.u32 %s36, 1
        %s273 = scalar_lea.sflag [#allocation3], %s272
        %s274 = sand.u32 %s36, 1
        %s275 = smul.addr %s274, 256
        %s276 = scalar_lea.vmem [#allocation2], %s275
        // Predicated region
        $region37: #{tpu_custom_call.1} parent=35 // pred_check
          %p277 = pneg %p49
        $region38: #{tpu_custom_call.1} parent=35 // pred_check_branch
          %279 = sbr.rel (%p277) target = $region40
        $region39: #{tpu_custom_call.1} parent=35 // pred_region
          %280 = dma.done %s273, 4096
        $region40: #{tpu_custom_call.1} parent=35 // pred_fallthru
          _
        // Predicated region
        $region41: #{tpu_custom_call.1} parent=35 // pred_check
          %p281 = pneg %p70
        $region42: #{tpu_custom_call.1} parent=35 // pred_check_branch
          %283 = sbr.rel (%p281) target = $region44
        $region43: #{tpu_custom_call.1} parent=35 // pred_region
          %284 = dma.done [#allocation6], 2048
        $region44: #{tpu_custom_call.1} parent=35 // pred_fallthru
          _
        // Predicated region
        $region45: #{tpu_custom_call.1} parent=35 // pred_check
          %p285 = pneg %p91
        $region46: #{tpu_custom_call.1} parent=35 // pred_check_branch
          %287 = sbr.rel (%p285) target = $region48
        $region47: #{tpu_custom_call.1} parent=35 // pred_region
          %288 = dma.done [#allocation6], 2048
        $region48: #{tpu_custom_call.1} parent=35 // pred_fallthru
          _
        %s289 = sand.u32 %s36, 1
        %s290 = scalar_lea.sflag [#allocation3], %s289
        %s291 = sand.u32 %s36, 1
        %s292 = smul.addr %s291, 256
        %s293 = scalar_lea.vmem [#allocation2], %s292
        %p294 = pneg %p49
        %p295 = pneg %p46
        %p296 = pneg %p70
        %p297 = pneg %p67
        %p298 = pneg %p91
        %p299 = pneg %p88
        %p300 = pneg %p112
        %p301 = pneg %p109
        %p302 = pneg %p138
        %p303 = pneg %p135
        %s304 = sand.u32 %s125, 1
        %s305 = scalar_lea.sflag [#allocation4], %s304
        %s306 = sand.u32 %s125, 1
        %s307 = smul.addr %s306, 256
        %s308 = scalar_lea.vmem [#allocation8], %s307
        %p309 = pneg %p164
        %p310 = pneg %p161
        %s311 = sand.u32 %s28, 1
        %s312 = scalar_lea.sflag [#allocation10], %s311
        %s313 = sand.u32 %s151, 1
        %s314 = smul.addr %s313, 2
        %s315 = scalar_lea.vmem [#allocation9], %s314
        %p316 = pneg %p190
        %p317 = pneg %p187
        %s318 = sand.u32 %s28, 1
        %s319 = scalar_lea.sflag [#allocation10], %s318
        %s320 = sand.u32 %s177, 1
        %s321 = scalar_lea.vmem [#allocation11], %s320
        %s322 = smul.u32 32, %s28
        %s323 = ssub.s32 50, %s322
        %p324 = scmp.lt.s32.totalorder %s323, 32
        %s325 = scalar_select %p324, %s323, 32
        %s326 = smul.u32 128, %s325
        %s327 = smul.u32 32, %s28
        %s328 = ssub.s32 50, %s327
        %p329 = scmp.lt.s32.totalorder %s328, 32
        %s330 = scalar_select %p329, %s328, 32
        %s331 = smul.u32 128, %s330
        %v332 = vld [vmem:[%s276] sm:$0xff]
        %v333 = vld [vmem:[%s276 + $0x8] sm:$0xff]
        %v334 = vld [vmem:[%s276 + $0x10] sm:$0xff]
        %v335 = vld [vmem:[%s276 + $0x18] sm:$0xff]
        %v336 = vld [vmem:[%s276 + $0x20] sm:$0xff]
        %v337 = vld [vmem:[%s276 + $0x28] sm:$0xff]
        %v338 = vld [vmem:[%s276 + $0x30] sm:$0xff]
        %v339 = vld [vmem:[%s276 + $0x38] sm:$0xff]
        %v340 = vld [vmem:[%s276 + $0x40] sm:$0xff]
        %v341 = vld [vmem:[%s276 + $0x48] sm:$0xff]
        %v342 = vld [vmem:[%s276 + $0x50] sm:$0xff]
        %v343 = vld [vmem:[%s276 + $0x58] sm:$0xff]
        %v344 = vld [vmem:[%s276 + $0x60] sm:$0xff]
        %v345 = vld [vmem:[%s276 + $0x68] sm:$0xff]
        %v346 = vld [vmem:[%s276 + $0x70] sm:$0xff]
        %v347 = vld [vmem:[%s276 + $0x78] sm:$0xff]
        %v348 = vld [vmem:[%s276 + $0x80] sm:$0xff]
        %v349 = vld [vmem:[%s276 + $0x88] sm:$0xff]
        %v350 = vld [vmem:[%s276 + $0x90] sm:$0xff]
        %v351 = vld [vmem:[%s276 + $0x98] sm:$0xff]
        %v352 = vld [vmem:[%s276 + $0xa0] sm:$0xff]
        %v353 = vld [vmem:[%s276 + $0xa8] sm:$0xff]
        %v354 = vld [vmem:[%s276 + $0xb0] sm:$0xff]
        %v355 = vld [vmem:[%s276 + $0xb8] sm:$0xff]
        %v356 = vld [vmem:[%s276 + $0xc0] sm:$0xff]
        %v357 = vld [vmem:[%s276 + $0xc8] sm:$0xff]
        %v358 = vld [vmem:[%s276 + $0xd0] sm:$0xff]
        %v359 = vld [vmem:[%s276 + $0xd8] sm:$0xff]
        %v360 = vld [vmem:[%s276 + $0xe0] sm:$0xff]
        %v361 = vld [vmem:[%s276 + $0xe8] sm:$0xff]
        %v362 = vld [vmem:[%s276 + $0xf0] sm:$0xff]
        %v363 = vld [vmem:[%s276 + $0xf8] sm:$0xff]
        %v364 = vld [vmem:[#allocation5] sm:$0xff]
        %v365 = vld [vmem:[#allocation5 + $0x8] sm:$0xff]
        %v366 = vld [vmem:[#allocation5 + $0x10] sm:$0xff]
        %v367 = vld [vmem:[#allocation5 + $0x18] sm:$0xff]
        %v368 = vld [vmem:[#allocation5 + $0x20] sm:$0xff]
        %v369 = vld [vmem:[#allocation5 + $0x28] sm:$0xff]
        %v370 = vld [vmem:[#allocation5 + $0x30] sm:$0xff]
        %v371 = vld [vmem:[#allocation5 + $0x38] sm:$0xff]
        %v372 = vld [vmem:[#allocation5 + $0x40] sm:$0xff]
        %v373 = vld [vmem:[#allocation5 + $0x48] sm:$0xff]
        %v374 = vld [vmem:[#allocation5 + $0x50] sm:$0xff]
        %v375 = vld [vmem:[#allocation5 + $0x58] sm:$0xff]
        %v376 = vld [vmem:[#allocation5 + $0x60] sm:$0xff]
        %v377 = vld [vmem:[#allocation5 + $0x68] sm:$0xff]
        %v378 = vld [vmem:[#allocation5 + $0x70] sm:$0xff]
        %v379 = vld [vmem:[#allocation5 + $0x78] sm:$0xff]
        %v380 = vld [vmem:[#allocation7] sm:$0xff]
        %v381 = vld [vmem:[#allocation7 + $0x8] sm:$0xff]
        %v382 = vld [vmem:[#allocation7 + $0x10] sm:$0xff]
        %v383 = vld [vmem:[#allocation7 + $0x18] sm:$0xff]
        %v384 = vld [vmem:[#allocation7 + $0x20] sm:$0xff]
        %v385 = vld [vmem:[#allocation7 + $0x28] sm:$0xff]
        %v386 = vld [vmem:[#allocation7 + $0x30] sm:$0xff]
        %v387 = vld [vmem:[#allocation7 + $0x38] sm:$0xff]
        %v388 = vld [vmem:[#allocation7 + $0x40] sm:$0xff]
        %v389 = vld [vmem:[#allocation7 + $0x48] sm:$0xff]
        %v390 = vld [vmem:[#allocation7 + $0x50] sm:$0xff]
        %v391 = vld [vmem:[#allocation7 + $0x58] sm:$0xff]
        %v392 = vld [vmem:[#allocation7 + $0x60] sm:$0xff]
        %v393 = vld [vmem:[#allocation7 + $0x68] sm:$0xff]
        %v394 = vld [vmem:[#allocation7 + $0x70] sm:$0xff]
        %v395 = vld [vmem:[#allocation7 + $0x78] sm:$0xff]
        %v396 = vld [vmem:[%s3] sm:$0x1]
        %397 = vmatprep.subr.mxu0 0.0
        %398 = vmatpush1.msra.mxu0 %v395
        %399 = vmatprep.subr.mxu0 0.0
        %400 = vmatpush1.msra.mxu0 %v394
        %401 = vmatprep.subr.mxu0 0.0
        %402 = vmatpush1.msra.mxu0 %v393
        %403 = vmatprep.subr.mxu0 0.0
        %404 = vmatpush1.msra.mxu0 %v392
        %405 = vmatprep.subr.mxu0 0.0
        %406 = vmatpush1.msra.mxu0 %v391
        %407 = vmatprep.subr.mxu0 0.0
        %408 = vmatpush1.msra.mxu0 %v390
        %409 = vmatprep.subr.mxu0 0.0
        %410 = vmatpush1.msra.mxu0 %v389
        %411 = vmatprep.subr.mxu0 0.0
        %412 = vmatpush1.msra.mxu0 %v388
        %413 = vmatprep.subr.mxu0 0.0
        %414 = vmatpush1.msra.mxu0 %v387
        %415 = vmatprep.subr.mxu0 0.0
        %416 = vmatpush1.msra.mxu0 %v386
        %417 = vmatprep.subr.mxu0 0.0
        %418 = vmatpush1.msra.mxu0 %v385
        %419 = vmatprep.subr.mxu0 0.0
        %420 = vmatpush1.msra.mxu0 %v384
        %421 = vmatprep.subr.mxu0 0.0
        %422 = vmatpush1.msra.mxu0 %v383
        %423 = vmatprep.subr.mxu0 0.0
        %424 = vmatpush1.msra.mxu0 %v382
        %425 = vmatprep.subr.mxu0 0.0
        %426 = vmatpush1.msra.mxu0 %v381
        %427 = vmatprep.subr.mxu0 0.0
        %428 = vmatpush1.msra.mxu0 %v380
        %429 = vmatprep.subr.mxu0 0.0
        %430 = vmatpush2.msra.mxu0 0.0
        %431 = vmatprep.subr.mxu0 0.0
        %432 = vmatpush2.msra.mxu0 0.0
        %433 = vmatprep.subr.mxu0 0.0
        %434 = vmatpush2.msra.mxu0 0.0
        %435 = vmatprep.subr.mxu0 0.0
        %436 = vmatpush2.msra.mxu0 0.0
        %437 = vmatprep.subr.mxu0 0.0
        %438 = vmatpush2.msra.mxu0 0.0
        %439 = vmatprep.subr.mxu0 0.0
        %440 = vmatpush2.msra.mxu0 0.0
        %441 = vmatprep.subr.mxu0 0.0
        %442 = vmatpush2.msra.mxu0 0.0
        %443 = vmatprep.subr.mxu0 0.0
        %444 = vmatpush2.msra.mxu0 0.0
        %445 = vmatprep.subr.mxu0 0.0
        %446 = vmatpush2.msra.mxu0 0.0
        %447 = vmatprep.subr.mxu0 0.0
        %448 = vmatpush2.msra.mxu0 0.0
        %449 = vmatprep.subr.mxu0 0.0
        %450 = vmatpush2.msra.mxu0 0.0
        %451 = vmatprep.subr.mxu0 0.0
        %452 = vmatpush2.msra.mxu0 0.0
        %453 = vmatprep.subr.mxu0 0.0
        %454 = vmatpush2.msra.mxu0 0.0
        %455 = vmatprep.subr.mxu0 0.0
        %456 = vmatpush2.msra.mxu0 0.0
        %457 = vmatprep.subr.mxu0 0.0
        %458 = vmatpush2.msra.mxu0 0.0
        %459 = vmatprep.subr.mxu0 0.0
        %460 = vmatpush2.msra.mxu0 0.0
        %461 = vmatprep.mubr.f32.mxu0 0.0
        %462 = vmatmul.mubr.f32.gmra.mxu0 %v332
        %v463 = vpop.f32.mrf.mxu0
        %v464 = vadd.f32 0.0, %v463
        %v465 = vpop.f32.mrf.mxu0
        %466 = vmatprep.mubr.f32.mxu0 0.0
        %467 = vmatmul.mubr.f32.gmra.mxu0 %v333
        %v468 = vpop.f32.mrf.mxu0
        %v469 = vadd.f32 0.0, %v468
        %v470 = vpop.f32.mrf.mxu0
        %471 = vmatprep.mubr.f32.mxu0 0.0
        %472 = vmatmul.mubr.f32.gmra.mxu0 %v334
        %v473 = vpop.f32.mrf.mxu0
        %v474 = vadd.f32 0.0, %v473
        %v475 = vpop.f32.mrf.mxu0
        %476 = vmatprep.mubr.f32.mxu0 0.0
        %477 = vmatmul.mubr.f32.gmra.mxu0 %v335
        %v478 = vpop.f32.mrf.mxu0
        %v479 = vadd.f32 0.0, %v478
        %v480 = vpop.f32.mrf.mxu0
        %481 = vmatprep.mubr.f32.mxu0 0.0
        %482 = vmatmul.mubr.f32.gmra.mxu0 %v336
        %v483 = vpop.f32.mrf.mxu0
        %v484 = vadd.f32 0.0, %v483
        %v485 = vpop.f32.mrf.mxu0
        %486 = vmatprep.mubr.f32.mxu0 0.0
        %487 = vmatmul.mubr.f32.gmra.mxu0 %v337
        %v488 = vpop.f32.mrf.mxu0
        %v489 = vadd.f32 0.0, %v488
        %v490 = vpop.f32.mrf.mxu0
        %491 = vmatprep.mubr.f32.mxu0 0.0
        %492 = vmatmul.mubr.f32.gmra.mxu0 %v338
        %v493 = vpop.f32.mrf.mxu0
        %v494 = vadd.f32 0.0, %v493
        %v495 = vpop.f32.mrf.mxu0
        %496 = vmatprep.mubr.f32.mxu0 0.0
        %497 = vmatmul.mubr.f32.gmra.mxu0 %v339
        %v498 = vpop.f32.mrf.mxu0
        %v499 = vadd.f32 0.0, %v498
        %v500 = vpop.f32.mrf.mxu0
        %501 = vmatprep.mubr.f32.mxu0 0.0
        %502 = vmatmul.mubr.f32.gmra.mxu0 %v340
        %v503 = vpop.f32.mrf.mxu0
        %v504 = vadd.f32 0.0, %v503
        %v505 = vpop.f32.mrf.mxu0
        %506 = vmatprep.mubr.f32.mxu0 0.0
        %507 = vmatmul.mubr.f32.gmra.mxu0 %v341
        %v508 = vpop.f32.mrf.mxu0
        %v509 = vadd.f32 0.0, %v508
        %v510 = vpop.f32.mrf.mxu0
        %511 = vmatprep.mubr.f32.mxu0 0.0
        %512 = vmatmul.mubr.f32.gmra.mxu0 %v342
        %v513 = vpop.f32.mrf.mxu0
        %v514 = vadd.f32 0.0, %v513
        %v515 = vpop.f32.mrf.mxu0
        %516 = vmatprep.mubr.f32.mxu0 0.0
        %517 = vmatmul.mubr.f32.gmra.mxu0 %v343
        %v518 = vpop.f32.mrf.mxu0
        %v519 = vadd.f32 0.0, %v518
        %v520 = vpop.f32.mrf.mxu0
        %521 = vmatprep.mubr.f32.mxu0 0.0
        %522 = vmatmul.mubr.f32.gmra.mxu0 %v344
        %v523 = vpop.f32.mrf.mxu0
        %v524 = vadd.f32 0.0, %v523
        %v525 = vpop.f32.mrf.mxu0
        %526 = vmatprep.mubr.f32.mxu0 0.0
        %527 = vmatmul.mubr.f32.gmra.mxu0 %v345
        %v528 = vpop.f32.mrf.mxu0
        %v529 = vadd.f32 0.0, %v528
        %v530 = vpop.f32.mrf.mxu0
        %531 = vmatprep.mubr.f32.mxu0 0.0
        %532 = vmatmul.mubr.f32.gmra.mxu0 %v346
        %v533 = vpop.f32.mrf.mxu0
        %v534 = vadd.f32 0.0, %v533
        %v535 = vpop.f32.mrf.mxu0
        %536 = vmatprep.mubr.f32.mxu0 0.0
        %537 = vmatmul.mubr.f32.gmra.mxu0 %v347
        %v538 = vpop.f32.mrf.mxu0
        %v539 = vadd.f32 0.0, %v538
        %v540 = vpop.f32.mrf.mxu0
        %541 = vmatprep.mubr.f32.mxu0 0.0
        %542 = vmatmul.mubr.f32.gmra.mxu0 %v348
        %v543 = vpop.f32.mrf.mxu0
        %v544 = vadd.f32 0.0, %v543
        %v545 = vpop.f32.mrf.mxu0
        %546 = vmatprep.mubr.f32.mxu0 0.0
        %547 = vmatmul.mubr.f32.gmra.mxu0 %v349
        %v548 = vpop.f32.mrf.mxu0
        %v549 = vadd.f32 0.0, %v548
        %v550 = vpop.f32.mrf.mxu0
        %551 = vmatprep.mubr.f32.mxu0 0.0
        %552 = vmatmul.mubr.f32.gmra.mxu0 %v350
        %v553 = vpop.f32.mrf.mxu0
        %v554 = vadd.f32 0.0, %v553
        %v555 = vpop.f32.mrf.mxu0
        %556 = vmatprep.mubr.f32.mxu0 0.0
        %557 = vmatmul.mubr.f32.gmra.mxu0 %v351
        %v558 = vpop.f32.mrf.mxu0
        %v559 = vadd.f32 0.0, %v558
        %v560 = vpop.f32.mrf.mxu0
        %561 = vmatprep.mubr.f32.mxu0 0.0
        %562 = vmatmul.mubr.f32.gmra.mxu0 %v352
        %v563 = vpop.f32.mrf.mxu0
        %v564 = vadd.f32 0.0, %v563
        %v565 = vpop.f32.mrf.mxu0
        %566 = vmatprep.mubr.f32.mxu0 0.0
        %567 = vmatmul.mubr.f32.gmra.mxu0 %v353
        %v568 = vpop.f32.mrf.mxu0
        %v569 = vadd.f32 0.0, %v568
        %v570 = vpop.f32.mrf.mxu0
        %571 = vmatprep.mubr.f32.mxu0 0.0
        %572 = vmatmul.mubr.f32.gmra.mxu0 %v354
        %v573 = vpop.f32.mrf.mxu0
        %v574 = vadd.f32 0.0, %v573
        %v575 = vpop.f32.mrf.mxu0
        %576 = vmatprep.mubr.f32.mxu0 0.0
        %577 = vmatmul.mubr.f32.gmra.mxu0 %v355
        %v578 = vpop.f32.mrf.mxu0
        %v579 = vadd.f32 0.0, %v578
        %v580 = vpop.f32.mrf.mxu0
        %581 = vmatprep.mubr.f32.mxu0 0.0
        %582 = vmatmul.mubr.f32.gmra.mxu0 %v356
        %v583 = vpop.f32.mrf.mxu0
        %v584 = vadd.f32 0.0, %v583
        %v585 = vpop.f32.mrf.mxu0
        %586 = vmatprep.mubr.f32.mxu0 0.0
        %587 = vmatmul.mubr.f32.gmra.mxu0 %v357
        %v588 = vpop.f32.mrf.mxu0
        %v589 = vadd.f32 0.0, %v588
        %v590 = vpop.f32.mrf.mxu0
        %591 = vmatprep.mubr.f32.mxu0 0.0
        %592 = vmatmul.mubr.f32.gmra.mxu0 %v358
        %v593 = vpop.f32.mrf.mxu0
        %v594 = vadd.f32 0.0, %v593
        %v595 = vpop.f32.mrf.mxu0
        %596 = vmatprep.mubr.f32.mxu0 0.0
        %597 = vmatmul.mubr.f32.gmra.mxu0 %v359
        %v598 = vpop.f32.mrf.mxu0
        %v599 = vadd.f32 0.0, %v598
        %v600 = vpop.f32.mrf.mxu0
        %601 = vmatprep.mubr.f32.mxu0 0.0
        %602 = vmatmul.mubr.f32.gmra.mxu0 %v360
        %v603 = vpop.f32.mrf.mxu0
        %v604 = vadd.f32 0.0, %v603
        %v605 = vpop.f32.mrf.mxu0
        %606 = vmatprep.mubr.f32.mxu0 0.0
        %607 = vmatmul.mubr.f32.gmra.mxu0 %v361
        %v608 = vpop.f32.mrf.mxu0
        %v609 = vadd.f32 0.0, %v608
        %v610 = vpop.f32.mrf.mxu0
        %611 = vmatprep.mubr.f32.mxu0 0.0
        %612 = vmatmul.mubr.f32.gmra.mxu0 %v362
        %v613 = vpop.f32.mrf.mxu0
        %v614 = vadd.f32 0.0, %v613
        %v615 = vpop.f32.mrf.mxu0
        %616 = vmatprep.mubr.f32.mxu0 0.0
        %617 = vmatmul.mubr.f32.gmra.mxu0 %v363
        %v618 = vpop.f32.mrf.mxu0
        %v619 = vadd.f32 0.0, %v618
        %v620 = vpop.f32.mrf.mxu0
        %621 = vdwg.mxu0
        %v623 = vlaneseq
        %v624 = vshrl.u32 %v623, 7
        %v625 = vsub.s32 0, %v624
        %v626 = vrot.slane %v396, %v625
        %v628 = vsub.f32 %v626, %v464
        %v629 = vsub.f32 %v626, %v469
        %v630 = vsub.f32 %v626, %v474
        %v631 = vsub.f32 %v626, %v479
        %v632 = vsub.f32 %v626, %v484
        %v633 = vsub.f32 %v626, %v489
        %v634 = vsub.f32 %v626, %v494
        %v635 = vsub.f32 %v626, %v499
        %v636 = vsub.f32 %v626, %v504
        %v637 = vsub.f32 %v626, %v509
        %v638 = vsub.f32 %v626, %v514
        %v639 = vsub.f32 %v626, %v519
        %v640 = vsub.f32 %v626, %v524
        %v641 = vsub.f32 %v626, %v529
        %v642 = vsub.f32 %v626, %v534
        %v643 = vsub.f32 %v626, %v539
        %v644 = vsub.f32 %v626, %v544
        %v645 = vsub.f32 %v626, %v549
        %v646 = vsub.f32 %v626, %v554
        %v647 = vsub.f32 %v626, %v559
        %v648 = vsub.f32 %v626, %v564
        %v649 = vsub.f32 %v626, %v569
        %v650 = vsub.f32 %v626, %v574
        %v651 = vsub.f32 %v626, %v579
        %v652 = vsub.f32 %v626, %v584
        %v653 = vsub.f32 %v626, %v589
        %v654 = vsub.f32 %v626, %v594
        %v655 = vsub.f32 %v626, %v599
        %v656 = vsub.f32 %v626, %v604
        %v657 = vsub.f32 %v626, %v609
        %v658 = vsub.f32 %v626, %v614
        %v659 = vsub.f32 %v626, %v619
        %v660 = vlaneseq
        %v661 = vand.u32 %v660, 127
        %662 = vmin.xlane.f32.xlu0 %v628
        %v663 = vpop.xlane.xlu0 %662
        %664 = vmin.xlane.f32.xlu0 %v629
        %v665 = vpop.xlane.xlu0 %664
        %666 = vmin.xlane.f32.xlu0 %v630
        %v667 = vpop.xlane.xlu0 %666
        %668 = vmin.xlane.f32.xlu0 %v631
        %v669 = vpop.xlane.xlu0 %668
        %670 = vmin.xlane.f32.xlu0 %v632
        %v671 = vpop.xlane.xlu0 %670
        %672 = vmin.xlane.f32.xlu0 %v633
        %v673 = vpop.xlane.xlu0 %672
        %674 = vmin.xlane.f32.xlu0 %v634
        %v675 = vpop.xlane.xlu0 %674
        %676 = vmin.xlane.f32.xlu0 %v635
        %v677 = vpop.xlane.xlu0 %676
        %678 = vmin.xlane.f32.xlu0 %v636
        %v679 = vpop.xlane.xlu0 %678
        %680 = vmin.xlane.f32.xlu0 %v637
        %v681 = vpop.xlane.xlu0 %680
        %682 = vmin.xlane.f32.xlu0 %v638
        %v683 = vpop.xlane.xlu0 %682
        %684 = vmin.xlane.f32.xlu0 %v639
        %v685 = vpop.xlane.xlu0 %684
        %686 = vmin.xlane.f32.xlu0 %v640
        %v687 = vpop.xlane.xlu0 %686
        %688 = vmin.xlane.f32.xlu0 %v641
        %v689 = vpop.xlane.xlu0 %688
        %690 = vmin.xlane.f32.xlu0 %v642
        %v691 = vpop.xlane.xlu0 %690
        %692 = vmin.xlane.f32.xlu0 %v643
        %v693 = vpop.xlane.xlu0 %692
        %694 = vmin.xlane.f32.xlu0 %v644
        %v695 = vpop.xlane.xlu0 %694
        %696 = vmin.xlane.f32.xlu0 %v645
        %v697 = vpop.xlane.xlu0 %696
        %698 = vmin.xlane.f32.xlu0 %v646
        %v699 = vpop.xlane.xlu0 %698
        %700 = vmin.xlane.f32.xlu0 %v647
        %v701 = vpop.xlane.xlu0 %700
        %702 = vmin.xlane.f32.xlu0 %v648
        %v703 = vpop.xlane.xlu0 %702
        %704 = vmin.xlane.f32.xlu0 %v649
        %v705 = vpop.xlane.xlu0 %704
        %706 = vmin.xlane.f32.xlu0 %v650
        %v707 = vpop.xlane.xlu0 %706
        %708 = vmin.xlane.f32.xlu0 %v651
        %v709 = vpop.xlane.xlu0 %708
        %710 = vmin.xlane.f32.xlu0 %v652
        %v711 = vpop.xlane.xlu0 %710
        %712 = vmin.xlane.f32.xlu0 %v653
        %v713 = vpop.xlane.xlu0 %712
        %714 = vmin.xlane.f32.xlu0 %v654
        %v715 = vpop.xlane.xlu0 %714
        %716 = vmin.xlane.f32.xlu0 %v655
        %v717 = vpop.xlane.xlu0 %716
        %718 = vmin.xlane.f32.xlu0 %v656
        %v719 = vpop.xlane.xlu0 %718
        %720 = vmin.xlane.f32.xlu0 %v657
        %v721 = vpop.xlane.xlu0 %720
        %722 = vmin.xlane.f32.xlu0 %v658
        %v723 = vpop.xlane.xlu0 %722
        %724 = vmin.xlane.f32.xlu0 %v659
        %v725 = vpop.xlane.xlu0 %724
        %vm726 = vcmp.le.f32.partialorder %v628, %v663
        %vm727 = vcmp.le.f32.partialorder %v629, %v665
        %vm728 = vcmp.le.f32.partialorder %v630, %v667
        %vm729 = vcmp.le.f32.partialorder %v631, %v669
        %vm730 = vcmp.le.f32.partialorder %v632, %v671
        %vm731 = vcmp.le.f32.partialorder %v633, %v673
        %vm732 = vcmp.le.f32.partialorder %v634, %v675
        %vm733 = vcmp.le.f32.partialorder %v635, %v677
        %vm734 = vcmp.le.f32.partialorder %v636, %v679
        %vm735 = vcmp.le.f32.partialorder %v637, %v681
        %vm736 = vcmp.le.f32.partialorder %v638, %v683
        %vm737 = vcmp.le.f32.partialorder %v639, %v685
        %vm738 = vcmp.le.f32.partialorder %v640, %v687
        %vm739 = vcmp.le.f32.partialorder %v641, %v689
        %vm740 = vcmp.le.f32.partialorder %v642, %v691
        %vm741 = vcmp.le.f32.partialorder %v643, %v693
        %vm742 = vcmp.le.f32.partialorder %v644, %v695
        %vm743 = vcmp.le.f32.partialorder %v645, %v697
        %vm744 = vcmp.le.f32.partialorder %v646, %v699
        %vm745 = vcmp.le.f32.partialorder %v647, %v701
        %vm746 = vcmp.le.f32.partialorder %v648, %v703
        %vm747 = vcmp.le.f32.partialorder %v649, %v705
        %vm748 = vcmp.le.f32.partialorder %v650, %v707
        %vm749 = vcmp.le.f32.partialorder %v651, %v709
        %vm750 = vcmp.le.f32.partialorder %v652, %v711
        %vm751 = vcmp.le.f32.partialorder %v653, %v713
        %vm752 = vcmp.le.f32.partialorder %v654, %v715
        %vm753 = vcmp.le.f32.partialorder %v655, %v717
        %vm754 = vcmp.le.f32.partialorder %v656, %v719
        %vm755 = vcmp.le.f32.partialorder %v657, %v721
        %vm756 = vcmp.le.f32.partialorder %v658, %v723
        %vm757 = vcmp.le.f32.partialorder %v659, %v725
        %v758 = vsel %vm726, %v661, 128
        %v759 = vsel %vm727, %v661, 128
        %v760 = vsel %vm728, %v661, 128
        %v761 = vsel %vm729, %v661, 128
        %v762 = vsel %vm730, %v661, 128
        %v763 = vsel %vm731, %v661, 128
        %v764 = vsel %vm732, %v661, 128
        %v765 = vsel %vm733, %v661, 128
        %v766 = vsel %vm734, %v661, 128
        %v767 = vsel %vm735, %v661, 128
        %v768 = vsel %vm736, %v661, 128
        %v769 = vsel %vm737, %v661, 128
        %v770 = vsel %vm738, %v661, 128
        %v771 = vsel %vm739, %v661, 128
        %v772 = vsel %vm740, %v661, 128
        %v773 = vsel %vm741, %v661, 128
        %v774 = vsel %vm742, %v661, 128
        %v775 = vsel %vm743, %v661, 128
        %v776 = vsel %vm744, %v661, 128
        %v777 = vsel %vm745, %v661, 128
        %v778 = vsel %vm746, %v661, 128
        %v779 = vsel %vm747, %v661, 128
        %v780 = vsel %vm748, %v661, 128
        %v781 = vsel %vm749, %v661, 128
        %v782 = vsel %vm750, %v661, 128
        %v783 = vsel %vm751, %v661, 128
        %v784 = vsel %vm752, %v661, 128
        %v785 = vsel %vm753, %v661, 128
        %v786 = vsel %vm754, %v661, 128
        %v787 = vsel %vm755, %v661, 128
        %v788 = vsel %vm756, %v661, 128
        %v789 = vsel %vm757, %v661, 128
        %v790 = vand.u32 %v758, 65535
        %v791 = vshra.s32 %v758, 16
        %v792 = vcvt.s32.f32 %v790
        %v793 = vcvt.s32.f32 %v791
        %794 = vmin.xlane.f32.xlu0 %v793
        %v795 = vpop.xlane.xlu0 %794
        %vm796 = vcmp.eq.f32.partialorder %v793, %v795
        %v797 = vsel %vm796, %v792, inf
        %798 = vmin.xlane.f32.xlu0 %v797
        %v799 = vpop.xlane.xlu0 %798
        %v800 = vcvt.f32.s32 %v799
        %v801 = vcvt.f32.s32 %v795
        %v802 = vshll.u32 %v801, 16
        %v803 = vadd.s32 %v802, %v800
        %v804 = vand.u32 %v759, 65535
        %v805 = vshra.s32 %v759, 16
        %v806 = vcvt.s32.f32 %v804
        %v807 = vcvt.s32.f32 %v805
        %808 = vmin.xlane.f32.xlu0 %v807
        %v809 = vpop.xlane.xlu0 %808
        %vm810 = vcmp.eq.f32.partialorder %v807, %v809
        %v811 = vsel %vm810, %v806, inf
        %812 = vmin.xlane.f32.xlu0 %v811
        %v813 = vpop.xlane.xlu0 %812
        %v814 = vcvt.f32.s32 %v813
        %v815 = vcvt.f32.s32 %v809
        %v816 = vshll.u32 %v815, 16
        %v817 = vadd.s32 %v816, %v814
        %v818 = vand.u32 %v760, 65535
        %v819 = vshra.s32 %v760, 16
        %v820 = vcvt.s32.f32 %v818
        %v821 = vcvt.s32.f32 %v819
        %822 = vmin.xlane.f32.xlu0 %v821
        %v823 = vpop.xlane.xlu0 %822
        %vm824 = vcmp.eq.f32.partialorder %v821, %v823
        %v825 = vsel %vm824, %v820, inf
        %826 = vmin.xlane.f32.xlu0 %v825
        %v827 = vpop.xlane.xlu0 %826
        %v828 = vcvt.f32.s32 %v827
        %v829 = vcvt.f32.s32 %v823
        %v830 = vshll.u32 %v829, 16
        %v831 = vadd.s32 %v830, %v828
        %v832 = vand.u32 %v761, 65535
        %v833 = vshra.s32 %v761, 16
        %v834 = vcvt.s32.f32 %v832
        %v835 = vcvt.s32.f32 %v833
        %836 = vmin.xlane.f32.xlu0 %v835
        %v837 = vpop.xlane.xlu0 %836
        %vm838 = vcmp.eq.f32.partialorder %v835, %v837
        %v839 = vsel %vm838, %v834, inf
        %840 = vmin.xlane.f32.xlu0 %v839
        %v841 = vpop.xlane.xlu0 %840
        %v842 = vcvt.f32.s32 %v841
        %v843 = vcvt.f32.s32 %v837
        %v844 = vshll.u32 %v843, 16
        %v845 = vadd.s32 %v844, %v842
        %v846 = vand.u32 %v762, 65535
        %v847 = vshra.s32 %v762, 16
        %v848 = vcvt.s32.f32 %v846
        %v849 = vcvt.s32.f32 %v847
        %850 = vmin.xlane.f32.xlu0 %v849
        %v851 = vpop.xlane.xlu0 %850
        %vm852 = vcmp.eq.f32.partialorder %v849, %v851
        %v853 = vsel %vm852, %v848, inf
        %854 = vmin.xlane.f32.xlu0 %v853
        %v855 = vpop.xlane.xlu0 %854
        %v856 = vcvt.f32.s32 %v855
        %v857 = vcvt.f32.s32 %v851
        %v858 = vshll.u32 %v857, 16
        %v859 = vadd.s32 %v858, %v856
        %v860 = vand.u32 %v763, 65535
        %v861 = vshra.s32 %v763, 16
        %v862 = vcvt.s32.f32 %v860
        %v863 = vcvt.s32.f32 %v861
        %864 = vmin.xlane.f32.xlu0 %v863
        %v865 = vpop.xlane.xlu0 %864
        %vm866 = vcmp.eq.f32.partialorder %v863, %v865
        %v867 = vsel %vm866, %v862, inf
        %868 = vmin.xlane.f32.xlu0 %v867
        %v869 = vpop.xlane.xlu0 %868
        %v870 = vcvt.f32.s32 %v869
        %v871 = vcvt.f32.s32 %v865
        %v872 = vshll.u32 %v871, 16
        %v873 = vadd.s32 %v872, %v870
        %v874 = vand.u32 %v764, 65535
        %v875 = vshra.s32 %v764, 16
        %v876 = vcvt.s32.f32 %v874
        %v877 = vcvt.s32.f32 %v875
        %878 = vmin.xlane.f32.xlu0 %v877
        %v879 = vpop.xlane.xlu0 %878
        %vm880 = vcmp.eq.f32.partialorder %v877, %v879
        %v881 = vsel %vm880, %v876, inf
        %882 = vmin.xlane.f32.xlu0 %v881
        %v883 = vpop.xlane.xlu0 %882
        %v884 = vcvt.f32.s32 %v883
        %v885 = vcvt.f32.s32 %v879
        %v886 = vshll.u32 %v885, 16
        %v887 = vadd.s32 %v886, %v884
        %v888 = vand.u32 %v765, 65535
        %v889 = vshra.s32 %v765, 16
        %v890 = vcvt.s32.f32 %v888
        %v891 = vcvt.s32.f32 %v889
        %892 = vmin.xlane.f32.xlu0 %v891
        %v893 = vpop.xlane.xlu0 %892
        %vm894 = vcmp.eq.f32.partialorder %v891, %v893
        %v895 = vsel %vm894, %v890, inf
        %896 = vmin.xlane.f32.xlu0 %v895
        %v897 = vpop.xlane.xlu0 %896
        %v898 = vcvt.f32.s32 %v897
        %v899 = vcvt.f32.s32 %v893
        %v900 = vshll.u32 %v899, 16
        %v901 = vadd.s32 %v900, %v898
        %v902 = vand.u32 %v766, 65535
        %v903 = vshra.s32 %v766, 16
        %v904 = vcvt.s32.f32 %v902
        %v905 = vcvt.s32.f32 %v903
        %906 = vmin.xlane.f32.xlu0 %v905
        %v907 = vpop.xlane.xlu0 %906
        %vm908 = vcmp.eq.f32.partialorder %v905, %v907
        %v909 = vsel %vm908, %v904, inf
        %910 = vmin.xlane.f32.xlu0 %v909
        %v911 = vpop.xlane.xlu0 %910
        %v912 = vcvt.f32.s32 %v911
        %v913 = vcvt.f32.s32 %v907
        %v914 = vshll.u32 %v913, 16
        %v915 = vadd.s32 %v914, %v912
        %v916 = vand.u32 %v767, 65535
        %v917 = vshra.s32 %v767, 16
        %v918 = vcvt.s32.f32 %v916
        %v919 = vcvt.s32.f32 %v917
        %920 = vmin.xlane.f32.xlu0 %v919
        %v921 = vpop.xlane.xlu0 %920
        %vm922 = vcmp.eq.f32.partialorder %v919, %v921
        %v923 = vsel %vm922, %v918, inf
        %924 = vmin.xlane.f32.xlu0 %v923
        %v925 = vpop.xlane.xlu0 %924
        %v926 = vcvt.f32.s32 %v925
        %v927 = vcvt.f32.s32 %v921
        %v928 = vshll.u32 %v927, 16
        %v929 = vadd.s32 %v928, %v926
        %v930 = vand.u32 %v768, 65535
        %v931 = vshra.s32 %v768, 16
        %v932 = vcvt.s32.f32 %v930
        %v933 = vcvt.s32.f32 %v931
        %934 = vmin.xlane.f32.xlu0 %v933
        %v935 = vpop.xlane.xlu0 %934
        %vm936 = vcmp.eq.f32.partialorder %v933, %v935
        %v937 = vsel %vm936, %v932, inf
        %938 = vmin.xlane.f32.xlu0 %v937
        %v939 = vpop.xlane.xlu0 %938
        %v940 = vcvt.f32.s32 %v939
        %v941 = vcvt.f32.s32 %v935
        %v942 = vshll.u32 %v941, 16
        %v943 = vadd.s32 %v942, %v940
        %v944 = vand.u32 %v769, 65535
        %v945 = vshra.s32 %v769, 16
        %v946 = vcvt.s32.f32 %v944
        %v947 = vcvt.s32.f32 %v945
        %948 = vmin.xlane.f32.xlu0 %v947
        %v949 = vpop.xlane.xlu0 %948
        %vm950 = vcmp.eq.f32.partialorder %v947, %v949
        %v951 = vsel %vm950, %v946, inf
        %952 = vmin.xlane.f32.xlu0 %v951
        %v953 = vpop.xlane.xlu0 %952
        %v954 = vcvt.f32.s32 %v953
        %v955 = vcvt.f32.s32 %v949
        %v956 = vshll.u32 %v955, 16
        %v957 = vadd.s32 %v956, %v954
        %v958 = vand.u32 %v770, 65535
        %v959 = vshra.s32 %v770, 16
        %v960 = vcvt.s32.f32 %v958
        %v961 = vcvt.s32.f32 %v959
        %962 = vmin.xlane.f32.xlu0 %v961
        %v963 = vpop.xlane.xlu0 %962
        %vm964 = vcmp.eq.f32.partialorder %v961, %v963
        %v965 = vsel %vm964, %v960, inf
        %966 = vmin.xlane.f32.xlu0 %v965
        %v967 = vpop.xlane.xlu0 %966
        %v968 = vcvt.f32.s32 %v967
        %v969 = vcvt.f32.s32 %v963
        %v970 = vshll.u32 %v969, 16
        %v971 = vadd.s32 %v970, %v968
        %v972 = vand.u32 %v771, 65535
        %v973 = vshra.s32 %v771, 16
        %v974 = vcvt.s32.f32 %v972
        %v975 = vcvt.s32.f32 %v973
        %976 = vmin.xlane.f32.xlu0 %v975
        %v977 = vpop.xlane.xlu0 %976
        %vm978 = vcmp.eq.f32.partialorder %v975, %v977
        %v979 = vsel %vm978, %v974, inf
        %980 = vmin.xlane.f32.xlu0 %v979
        %v981 = vpop.xlane.xlu0 %980
        %v982 = vcvt.f32.s32 %v981
        %v983 = vcvt.f32.s32 %v977
        %v984 = vshll.u32 %v983, 16
        %v985 = vadd.s32 %v984, %v982
        %v986 = vand.u32 %v772, 65535
        %v987 = vshra.s32 %v772, 16
        %v988 = vcvt.s32.f32 %v986
        %v989 = vcvt.s32.f32 %v987
        %990 = vmin.xlane.f32.xlu0 %v989
        %v991 = vpop.xlane.xlu0 %990
        %vm992 = vcmp.eq.f32.partialorder %v989, %v991
        %v993 = vsel %vm992, %v988, inf
        %994 = vmin.xlane.f32.xlu0 %v993
        %v995 = vpop.xlane.xlu0 %994
        %v996 = vcvt.f32.s32 %v995
        %v997 = vcvt.f32.s32 %v991
        %v998 = vshll.u32 %v997, 16
        %v999 = vadd.s32 %v998, %v996
        %v1000 = vand.u32 %v773, 65535
        %v1001 = vshra.s32 %v773, 16
        %v1002 = vcvt.s32.f32 %v1000
        %v1003 = vcvt.s32.f32 %v1001
        %1004 = vmin.xlane.f32.xlu0 %v1003
        %v1005 = vpop.xlane.xlu0 %1004
        %vm1006 = vcmp.eq.f32.partialorder %v1003, %v1005
        %v1007 = vsel %vm1006, %v1002, inf
        %1008 = vmin.xlane.f32.xlu0 %v1007
        %v1009 = vpop.xlane.xlu0 %1008
        %v1010 = vcvt.f32.s32 %v1009
        %v1011 = vcvt.f32.s32 %v1005
        %v1012 = vshll.u32 %v1011, 16
        %v1013 = vadd.s32 %v1012, %v1010
        %v1014 = vand.u32 %v774, 65535
        %v1015 = vshra.s32 %v774, 16
        %v1016 = vcvt.s32.f32 %v1014
        %v1017 = vcvt.s32.f32 %v1015
        %1018 = vmin.xlane.f32.xlu0 %v1017
        %v1019 = vpop.xlane.xlu0 %1018
        %vm1020 = vcmp.eq.f32.partialorder %v1017, %v1019
        %v1021 = vsel %vm1020, %v1016, inf
        %1022 = vmin.xlane.f32.xlu0 %v1021
        %v1023 = vpop.xlane.xlu0 %1022
        %v1024 = vcvt.f32.s32 %v1023
        %v1025 = vcvt.f32.s32 %v1019
        %v1026 = vshll.u32 %v1025, 16
        %v1027 = vadd.s32 %v1026, %v1024
        %v1028 = vand.u32 %v775, 65535
        %v1029 = vshra.s32 %v775, 16
        %v1030 = vcvt.s32.f32 %v1028
        %v1031 = vcvt.s32.f32 %v1029
        %1032 = vmin.xlane.f32.xlu0 %v1031
        %v1033 = vpop.xlane.xlu0 %1032
        %vm1034 = vcmp.eq.f32.partialorder %v1031, %v1033
        %v1035 = vsel %vm1034, %v1030, inf
        %1036 = vmin.xlane.f32.xlu0 %v1035
        %v1037 = vpop.xlane.xlu0 %1036
        %v1038 = vcvt.f32.s32 %v1037
        %v1039 = vcvt.f32.s32 %v1033
        %v1040 = vshll.u32 %v1039, 16
        %v1041 = vadd.s32 %v1040, %v1038
        %v1042 = vand.u32 %v776, 65535
        %v1043 = vshra.s32 %v776, 16
        %v1044 = vcvt.s32.f32 %v1042
        %v1045 = vcvt.s32.f32 %v1043
        %1046 = vmin.xlane.f32.xlu0 %v1045
        %v1047 = vpop.xlane.xlu0 %1046
        %vm1048 = vcmp.eq.f32.partialorder %v1045, %v1047
        %v1049 = vsel %vm1048, %v1044, inf
        %1050 = vmin.xlane.f32.xlu0 %v1049
        %v1051 = vpop.xlane.xlu0 %1050
        %v1052 = vcvt.f32.s32 %v1051
        %v1053 = vcvt.f32.s32 %v1047
        %v1054 = vshll.u32 %v1053, 16
        %v1055 = vadd.s32 %v1054, %v1052
        %v1056 = vand.u32 %v777, 65535
        %v1057 = vshra.s32 %v777, 16
        %v1058 = vcvt.s32.f32 %v1056
        %v1059 = vcvt.s32.f32 %v1057
        %1060 = vmin.xlane.f32.xlu0 %v1059
        %v1061 = vpop.xlane.xlu0 %1060
        %vm1062 = vcmp.eq.f32.partialorder %v1059, %v1061
        %v1063 = vsel %vm1062, %v1058, inf
        %1064 = vmin.xlane.f32.xlu0 %v1063
        %v1065 = vpop.xlane.xlu0 %1064
        %v1066 = vcvt.f32.s32 %v1065
        %v1067 = vcvt.f32.s32 %v1061
        %v1068 = vshll.u32 %v1067, 16
        %v1069 = vadd.s32 %v1068, %v1066
        %v1070 = vand.u32 %v778, 65535
        %v1071 = vshra.s32 %v778, 16
        %v1072 = vcvt.s32.f32 %v1070
        %v1073 = vcvt.s32.f32 %v1071
        %1074 = vmin.xlane.f32.xlu0 %v1073
        %v1075 = vpop.xlane.xlu0 %1074
        %vm1076 = vcmp.eq.f32.partialorder %v1073, %v1075
        %v1077 = vsel %vm1076, %v1072, inf
        %1078 = vmin.xlane.f32.xlu0 %v1077
        %v1079 = vpop.xlane.xlu0 %1078
        %v1080 = vcvt.f32.s32 %v1079
        %v1081 = vcvt.f32.s32 %v1075
        %v1082 = vshll.u32 %v1081, 16
        %v1083 = vadd.s32 %v1082, %v1080
        %v1084 = vand.u32 %v779, 65535
        %v1085 = vshra.s32 %v779, 16
        %v1086 = vcvt.s32.f32 %v1084
        %v1087 = vcvt.s32.f32 %v1085
        %1088 = vmin.xlane.f32.xlu0 %v1087
        %v1089 = vpop.xlane.xlu0 %1088
        %vm1090 = vcmp.eq.f32.partialorder %v1087, %v1089
        %v1091 = vsel %vm1090, %v1086, inf
        %1092 = vmin.xlane.f32.xlu0 %v1091
        %v1093 = vpop.xlane.xlu0 %1092
        %v1094 = vcvt.f32.s32 %v1093
        %v1095 = vcvt.f32.s32 %v1089
        %v1096 = vshll.u32 %v1095, 16
        %v1097 = vadd.s32 %v1096, %v1094
        %v1098 = vand.u32 %v780, 65535
        %v1099 = vshra.s32 %v780, 16
        %v1100 = vcvt.s32.f32 %v1098
        %v1101 = vcvt.s32.f32 %v1099
        %1102 = vmin.xlane.f32.xlu0 %v1101
        %v1103 = vpop.xlane.xlu0 %1102
        %vm1104 = vcmp.eq.f32.partialorder %v1101, %v1103
        %v1105 = vsel %vm1104, %v1100, inf
        %1106 = vmin.xlane.f32.xlu0 %v1105
        %v1107 = vpop.xlane.xlu0 %1106
        %v1108 = vcvt.f32.s32 %v1107
        %v1109 = vcvt.f32.s32 %v1103
        %v1110 = vshll.u32 %v1109, 16
        %v1111 = vadd.s32 %v1110, %v1108
        %v1112 = vand.u32 %v781, 65535
        %v1113 = vshra.s32 %v781, 16
        %v1114 = vcvt.s32.f32 %v1112
        %v1115 = vcvt.s32.f32 %v1113
        %1116 = vmin.xlane.f32.xlu0 %v1115
        %v1117 = vpop.xlane.xlu0 %1116
        %vm1118 = vcmp.eq.f32.partialorder %v1115, %v1117
        %v1119 = vsel %vm1118, %v1114, inf
        %1120 = vmin.xlane.f32.xlu0 %v1119
        %v1121 = vpop.xlane.xlu0 %1120
        %v1122 = vcvt.f32.s32 %v1121
        %v1123 = vcvt.f32.s32 %v1117
        %v1124 = vshll.u32 %v1123, 16
        %v1125 = vadd.s32 %v1124, %v1122
        %v1126 = vand.u32 %v782, 65535
        %v1127 = vshra.s32 %v782, 16
        %v1128 = vcvt.s32.f32 %v1126
        %v1129 = vcvt.s32.f32 %v1127
        %1130 = vmin.xlane.f32.xlu0 %v1129
        %v1131 = vpop.xlane.xlu0 %1130
        %vm1132 = vcmp.eq.f32.partialorder %v1129, %v1131
        %v1133 = vsel %vm1132, %v1128, inf
        %1134 = vmin.xlane.f32.xlu0 %v1133
        %v1135 = vpop.xlane.xlu0 %1134
        %v1136 = vcvt.f32.s32 %v1135
        %v1137 = vcvt.f32.s32 %v1131
        %v1138 = vshll.u32 %v1137, 16
        %v1139 = vadd.s32 %v1138, %v1136
        %v1140 = vand.u32 %v783, 65535
        %v1141 = vshra.s32 %v783, 16
        %v1142 = vcvt.s32.f32 %v1140
        %v1143 = vcvt.s32.f32 %v1141
        %1144 = vmin.xlane.f32.xlu0 %v1143
        %v1145 = vpop.xlane.xlu0 %1144
        %vm1146 = vcmp.eq.f32.partialorder %v1143, %v1145
        %v1147 = vsel %vm1146, %v1142, inf
        %1148 = vmin.xlane.f32.xlu0 %v1147
        %v1149 = vpop.xlane.xlu0 %1148
        %v1150 = vcvt.f32.s32 %v1149
        %v1151 = vcvt.f32.s32 %v1145
        %v1152 = vshll.u32 %v1151, 16
        %v1153 = vadd.s32 %v1152, %v1150
        %v1154 = vand.u32 %v784, 65535
        %v1155 = vshra.s32 %v784, 16
        %v1156 = vcvt.s32.f32 %v1154
        %v1157 = vcvt.s32.f32 %v1155
        %1158 = vmin.xlane.f32.xlu0 %v1157
        %v1159 = vpop.xlane.xlu0 %1158
        %vm1160 = vcmp.eq.f32.partialorder %v1157, %v1159
        %v1161 = vsel %vm1160, %v1156, inf
        %1162 = vmin.xlane.f32.xlu0 %v1161
        %v1163 = vpop.xlane.xlu0 %1162
        %v1164 = vcvt.f32.s32 %v1163
        %v1165 = vcvt.f32.s32 %v1159
        %v1166 = vshll.u32 %v1165, 16
        %v1167 = vadd.s32 %v1166, %v1164
        %v1168 = vand.u32 %v785, 65535
        %v1169 = vshra.s32 %v785, 16
        %v1170 = vcvt.s32.f32 %v1168
        %v1171 = vcvt.s32.f32 %v1169
        %1172 = vmin.xlane.f32.xlu0 %v1171
        %v1173 = vpop.xlane.xlu0 %1172
        %vm1174 = vcmp.eq.f32.partialorder %v1171, %v1173
        %v1175 = vsel %vm1174, %v1170, inf
        %1176 = vmin.xlane.f32.xlu0 %v1175
        %v1177 = vpop.xlane.xlu0 %1176
        %v1178 = vcvt.f32.s32 %v1177
        %v1179 = vcvt.f32.s32 %v1173
        %v1180 = vshll.u32 %v1179, 16
        %v1181 = vadd.s32 %v1180, %v1178
        %v1182 = vand.u32 %v786, 65535
        %v1183 = vshra.s32 %v786, 16
        %v1184 = vcvt.s32.f32 %v1182
        %v1185 = vcvt.s32.f32 %v1183
        %1186 = vmin.xlane.f32.xlu0 %v1185
        %v1187 = vpop.xlane.xlu0 %1186
        %vm1188 = vcmp.eq.f32.partialorder %v1185, %v1187
        %v1189 = vsel %vm1188, %v1184, inf
        %1190 = vmin.xlane.f32.xlu0 %v1189
        %v1191 = vpop.xlane.xlu0 %1190
        %v1192 = vcvt.f32.s32 %v1191
        %v1193 = vcvt.f32.s32 %v1187
        %v1194 = vshll.u32 %v1193, 16
        %v1195 = vadd.s32 %v1194, %v1192
        %v1196 = vand.u32 %v787, 65535
        %v1197 = vshra.s32 %v787, 16
        %v1198 = vcvt.s32.f32 %v1196
        %v1199 = vcvt.s32.f32 %v1197
        %1200 = vmin.xlane.f32.xlu0 %v1199
        %v1201 = vpop.xlane.xlu0 %1200
        %vm1202 = vcmp.eq.f32.partialorder %v1199, %v1201
        %v1203 = vsel %vm1202, %v1198, inf
        %1204 = vmin.xlane.f32.xlu0 %v1203
        %v1205 = vpop.xlane.xlu0 %1204
        %v1206 = vcvt.f32.s32 %v1205
        %v1207 = vcvt.f32.s32 %v1201
        %v1208 = vshll.u32 %v1207, 16
        %v1209 = vadd.s32 %v1208, %v1206
        %v1210 = vand.u32 %v788, 65535
        %v1211 = vshra.s32 %v788, 16
        %v1212 = vcvt.s32.f32 %v1210
        %v1213 = vcvt.s32.f32 %v1211
        %1214 = vmin.xlane.f32.xlu0 %v1213
        %v1215 = vpop.xlane.xlu0 %1214
        %vm1216 = vcmp.eq.f32.partialorder %v1213, %v1215
        %v1217 = vsel %vm1216, %v1212, inf
        %1218 = vmin.xlane.f32.xlu0 %v1217
        %v1219 = vpop.xlane.xlu0 %1218
        %v1220 = vcvt.f32.s32 %v1219
        %v1221 = vcvt.f32.s32 %v1215
        %v1222 = vshll.u32 %v1221, 16
        %v1223 = vadd.s32 %v1222, %v1220
        %v1224 = vand.u32 %v789, 65535
        %v1225 = vshra.s32 %v789, 16
        %v1226 = vcvt.s32.f32 %v1224
        %v1227 = vcvt.s32.f32 %v1225
        %1228 = vmin.xlane.f32.xlu0 %v1227
        %v1229 = vpop.xlane.xlu0 %1228
        %vm1230 = vcmp.eq.f32.partialorder %v1227, %v1229
        %v1231 = vsel %vm1230, %v1226, inf
        %1232 = vmin.xlane.f32.xlu0 %v1231
        %v1233 = vpop.xlane.xlu0 %1232
        %v1234 = vcvt.f32.s32 %v1233
        %v1235 = vcvt.f32.s32 %v1229
        %v1236 = vshll.u32 %v1235, 16
        %v1237 = vadd.s32 %v1236, %v1234
        %vm1238 = vcmp.eq.s32.totalorder %v661, %v803
        %vm1239 = vcmp.eq.s32.totalorder %v661, %v817
        %vm1240 = vcmp.eq.s32.totalorder %v661, %v831
        %vm1241 = vcmp.eq.s32.totalorder %v661, %v845
        %vm1242 = vcmp.eq.s32.totalorder %v661, %v859
        %vm1243 = vcmp.eq.s32.totalorder %v661, %v873
        %vm1244 = vcmp.eq.s32.totalorder %v661, %v887
        %vm1245 = vcmp.eq.s32.totalorder %v661, %v901
        %vm1246 = vcmp.eq.s32.totalorder %v661, %v915
        %vm1247 = vcmp.eq.s32.totalorder %v661, %v929
        %vm1248 = vcmp.eq.s32.totalorder %v661, %v943
        %vm1249 = vcmp.eq.s32.totalorder %v661, %v957
        %vm1250 = vcmp.eq.s32.totalorder %v661, %v971
        %vm1251 = vcmp.eq.s32.totalorder %v661, %v985
        %vm1252 = vcmp.eq.s32.totalorder %v661, %v999
        %vm1253 = vcmp.eq.s32.totalorder %v661, %v1013
        %vm1254 = vcmp.eq.s32.totalorder %v661, %v1027
        %vm1255 = vcmp.eq.s32.totalorder %v661, %v1041
        %vm1256 = vcmp.eq.s32.totalorder %v661, %v1055
        %vm1257 = vcmp.eq.s32.totalorder %v661, %v1069
        %vm1258 = vcmp.eq.s32.totalorder %v661, %v1083
        %vm1259 = vcmp.eq.s32.totalorder %v661, %v1097
        %vm1260 = vcmp.eq.s32.totalorder %v661, %v1111
        %vm1261 = vcmp.eq.s32.totalorder %v661, %v1125
        %vm1262 = vcmp.eq.s32.totalorder %v661, %v1139
        %vm1263 = vcmp.eq.s32.totalorder %v661, %v1153
        %vm1264 = vcmp.eq.s32.totalorder %v661, %v1167
        %vm1265 = vcmp.eq.s32.totalorder %v661, %v1181
        %vm1266 = vcmp.eq.s32.totalorder %v661, %v1195
        %vm1267 = vcmp.eq.s32.totalorder %v661, %v1209
        %vm1268 = vcmp.eq.s32.totalorder %v661, %v1223
        %vm1269 = vcmp.eq.s32.totalorder %v661, %v1237
        %v1270 = vsel %vm1238, 1, 0
        %v1271 = vsel %vm1239, 1, 0
        %v1272 = vsel %vm1240, 1, 0
        %v1273 = vsel %vm1241, 1, 0
        %v1274 = vsel %vm1242, 1, 0
        %v1275 = vsel %vm1243, 1, 0
        %v1276 = vsel %vm1244, 1, 0
        %v1277 = vsel %vm1245, 1, 0
        %v1278 = vsel %vm1246, 1, 0
        %v1279 = vsel %vm1247, 1, 0
        %v1280 = vsel %vm1248, 1, 0
        %v1281 = vsel %vm1249, 1, 0
        %v1282 = vsel %vm1250, 1, 0
        %v1283 = vsel %vm1251, 1, 0
        %v1284 = vsel %vm1252, 1, 0
        %v1285 = vsel %vm1253, 1, 0
        %v1286 = vsel %vm1254, 1, 0
        %v1287 = vsel %vm1255, 1, 0
        %v1288 = vsel %vm1256, 1, 0
        %v1289 = vsel %vm1257, 1, 0
        %v1290 = vsel %vm1258, 1, 0
        %v1291 = vsel %vm1259, 1, 0
        %v1292 = vsel %vm1260, 1, 0
        %v1293 = vsel %vm1261, 1, 0
        %v1294 = vsel %vm1262, 1, 0
        %v1295 = vsel %vm1263, 1, 0
        %v1296 = vsel %vm1264, 1, 0
        %v1297 = vsel %vm1265, 1, 0
        %v1298 = vsel %vm1266, 1, 0
        %v1299 = vsel %vm1267, 1, 0
        %v1300 = vsel %vm1268, 1, 0
        %v1301 = vsel %vm1269, 1, 0
        %v1302 = vcvt.s32.f32 %v1270
        %v1303 = vcvt.s32.f32 %v1271
        %v1304 = vcvt.s32.f32 %v1272
        %v1305 = vcvt.s32.f32 %v1273
        %v1306 = vcvt.s32.f32 %v1274
        %v1307 = vcvt.s32.f32 %v1275
        %v1308 = vcvt.s32.f32 %v1276
        %v1309 = vcvt.s32.f32 %v1277
        %v1310 = vcvt.s32.f32 %v1278
        %v1311 = vcvt.s32.f32 %v1279
        %v1312 = vcvt.s32.f32 %v1280
        %v1313 = vcvt.s32.f32 %v1281
        %v1314 = vcvt.s32.f32 %v1282
        %v1315 = vcvt.s32.f32 %v1283
        %v1316 = vcvt.s32.f32 %v1284
        %v1317 = vcvt.s32.f32 %v1285
        %v1318 = vcvt.s32.f32 %v1286
        %v1319 = vcvt.s32.f32 %v1287
        %v1320 = vcvt.s32.f32 %v1288
        %v1321 = vcvt.s32.f32 %v1289
        %v1322 = vcvt.s32.f32 %v1290
        %v1323 = vcvt.s32.f32 %v1291
        %v1324 = vcvt.s32.f32 %v1292
        %v1325 = vcvt.s32.f32 %v1293
        %v1326 = vcvt.s32.f32 %v1294
        %v1327 = vcvt.s32.f32 %v1295
        %v1328 = vcvt.s32.f32 %v1296
        %v1329 = vcvt.s32.f32 %v1297
        %v1330 = vcvt.s32.f32 %v1298
        %v1331 = vcvt.s32.f32 %v1299
        %v1332 = vcvt.s32.f32 %v1300
        %v1333 = vcvt.s32.f32 %v1301
        %1334 = vmatprep.subr.mxu0 0.0
        %1335 = vmatpush1.msra.mxu0 %v379
        %1336 = vmatprep.subr.mxu0 0.0
        %1337 = vmatpush1.msra.mxu0 %v378
        %1338 = vmatprep.subr.mxu0 0.0
        %1339 = vmatpush1.msra.mxu0 %v377
        %1340 = vmatprep.subr.mxu0 0.0
        %1341 = vmatpush1.msra.mxu0 %v376
        %1342 = vmatprep.subr.mxu0 0.0
        %1343 = vmatpush1.msra.mxu0 %v375
        %1344 = vmatprep.subr.mxu0 0.0
        %1345 = vmatpush1.msra.mxu0 %v374
        %1346 = vmatprep.subr.mxu0 0.0
        %1347 = vmatpush1.msra.mxu0 %v373
        %1348 = vmatprep.subr.mxu0 0.0
        %1349 = vmatpush1.msra.mxu0 %v372
        %1350 = vmatprep.subr.mxu0 0.0
        %1351 = vmatpush1.msra.mxu0 %v371
        %1352 = vmatprep.subr.mxu0 0.0
        %1353 = vmatpush1.msra.mxu0 %v370
        %1354 = vmatprep.subr.mxu0 0.0
        %1355 = vmatpush1.msra.mxu0 %v369
        %1356 = vmatprep.subr.mxu0 0.0
        %1357 = vmatpush1.msra.mxu0 %v368
        %1358 = vmatprep.subr.mxu0 0.0
        %1359 = vmatpush1.msra.mxu0 %v367
        %1360 = vmatprep.subr.mxu0 0.0
        %1361 = vmatpush1.msra.mxu0 %v366
        %1362 = vmatprep.subr.mxu0 0.0
        %1363 = vmatpush1.msra.mxu0 %v365
        %1364 = vmatprep.subr.mxu0 0.0
        %1365 = vmatpush1.msra.mxu0 %v364
        %1366 = vmatprep.subr.mxu0 0.0
        %1367 = vmatpush2.msra.mxu0 0.0
        %1368 = vmatprep.subr.mxu0 0.0
        %1369 = vmatpush2.msra.mxu0 0.0
        %1370 = vmatprep.subr.mxu0 0.0
        %1371 = vmatpush2.msra.mxu0 0.0
        %1372 = vmatprep.subr.mxu0 0.0
        %1373 = vmatpush2.msra.mxu0 0.0
        %1374 = vmatprep.subr.mxu0 0.0
        %1375 = vmatpush2.msra.mxu0 0.0
        %1376 = vmatprep.subr.mxu0 0.0
        %1377 = vmatpush2.msra.mxu0 0.0
        %1378 = vmatprep.subr.mxu0 0.0
        %1379 = vmatpush2.msra.mxu0 0.0
        %1380 = vmatprep.subr.mxu0 0.0
        %1381 = vmatpush2.msra.mxu0 0.0
        %1382 = vmatprep.subr.mxu0 0.0
        %1383 = vmatpush2.msra.mxu0 0.0
        %1384 = vmatprep.subr.mxu0 0.0
        %1385 = vmatpush2.msra.mxu0 0.0
        %1386 = vmatprep.subr.mxu0 0.0
        %1387 = vmatpush2.msra.mxu0 0.0
        %1388 = vmatprep.subr.mxu0 0.0
        %1389 = vmatpush2.msra.mxu0 0.0
        %1390 = vmatprep.subr.mxu0 0.0
        %1391 = vmatpush2.msra.mxu0 0.0
        %1392 = vmatprep.subr.mxu0 0.0
        %1393 = vmatpush2.msra.mxu0 0.0
        %1394 = vmatprep.subr.mxu0 0.0
        %1395 = vmatpush2.msra.mxu0 0.0
        %1396 = vmatprep.subr.mxu0 0.0
        %1397 = vmatpush2.msra.mxu0 0.0
        %1398 = vmatprep.mubr.f32.mxu0 0.0
        %1399 = vmatmul.mubr.f32.gmra.mxu0 %v1302
        %v1400 = vpop.f32.mrf.mxu0
        %v1401 = vadd.f32 0.0, %v1400
        %v1402 = vpop.f32.mrf.mxu0
        %1403 = vmatprep.mubr.f32.mxu0 0.0
        %1404 = vmatmul.mubr.f32.gmra.mxu0 %v1303
        %v1405 = vpop.f32.mrf.mxu0
        %v1406 = vadd.f32 0.0, %v1405
        %v1407 = vpop.f32.mrf.mxu0
        %1408 = vmatprep.mubr.f32.mxu0 0.0
        %1409 = vmatmul.mubr.f32.gmra.mxu0 %v1304
        %v1410 = vpop.f32.mrf.mxu0
        %v1411 = vadd.f32 0.0, %v1410
        %v1412 = vpop.f32.mrf.mxu0
        %1413 = vmatprep.mubr.f32.mxu0 0.0
        %1414 = vmatmul.mubr.f32.gmra.mxu0 %v1305
        %v1415 = vpop.f32.mrf.mxu0
        %v1416 = vadd.f32 0.0, %v1415
        %v1417 = vpop.f32.mrf.mxu0
        %1418 = vmatprep.mubr.f32.mxu0 0.0
        %1419 = vmatmul.mubr.f32.gmra.mxu0 %v1306
        %v1420 = vpop.f32.mrf.mxu0
        %v1421 = vadd.f32 0.0, %v1420
        %v1422 = vpop.f32.mrf.mxu0
        %1423 = vmatprep.mubr.f32.mxu0 0.0
        %1424 = vmatmul.mubr.f32.gmra.mxu0 %v1307
        %v1425 = vpop.f32.mrf.mxu0
        %v1426 = vadd.f32 0.0, %v1425
        %v1427 = vpop.f32.mrf.mxu0
        %1428 = vmatprep.mubr.f32.mxu0 0.0
        %1429 = vmatmul.mubr.f32.gmra.mxu0 %v1308
        %v1430 = vpop.f32.mrf.mxu0
        %v1431 = vadd.f32 0.0, %v1430
        %v1432 = vpop.f32.mrf.mxu0
        %1433 = vmatprep.mubr.f32.mxu0 0.0
        %1434 = vmatmul.mubr.f32.gmra.mxu0 %v1309
        %v1435 = vpop.f32.mrf.mxu0
        %v1436 = vadd.f32 0.0, %v1435
        %v1437 = vpop.f32.mrf.mxu0
        %1438 = vmatprep.mubr.f32.mxu0 0.0
        %1439 = vmatmul.mubr.f32.gmra.mxu0 %v1310
        %v1440 = vpop.f32.mrf.mxu0
        %v1441 = vadd.f32 0.0, %v1440
        %v1442 = vpop.f32.mrf.mxu0
        %1443 = vmatprep.mubr.f32.mxu0 0.0
        %1444 = vmatmul.mubr.f32.gmra.mxu0 %v1311
        %v1445 = vpop.f32.mrf.mxu0
        %v1446 = vadd.f32 0.0, %v1445
        %v1447 = vpop.f32.mrf.mxu0
        %1448 = vmatprep.mubr.f32.mxu0 0.0
        %1449 = vmatmul.mubr.f32.gmra.mxu0 %v1312
        %v1450 = vpop.f32.mrf.mxu0
        %v1451 = vadd.f32 0.0, %v1450
        %v1452 = vpop.f32.mrf.mxu0
        %1453 = vmatprep.mubr.f32.mxu0 0.0
        %1454 = vmatmul.mubr.f32.gmra.mxu0 %v1313
        %v1455 = vpop.f32.mrf.mxu0
        %v1456 = vadd.f32 0.0, %v1455
        %v1457 = vpop.f32.mrf.mxu0
        %1458 = vmatprep.mubr.f32.mxu0 0.0
        %1459 = vmatmul.mubr.f32.gmra.mxu0 %v1314
        %v1460 = vpop.f32.mrf.mxu0
        %v1461 = vadd.f32 0.0, %v1460
        %v1462 = vpop.f32.mrf.mxu0
        %1463 = vmatprep.mubr.f32.mxu0 0.0
        %1464 = vmatmul.mubr.f32.gmra.mxu0 %v1315
        %v1465 = vpop.f32.mrf.mxu0
        %v1466 = vadd.f32 0.0, %v1465
        %v1467 = vpop.f32.mrf.mxu0
        %1468 = vmatprep.mubr.f32.mxu0 0.0
        %1469 = vmatmul.mubr.f32.gmra.mxu0 %v1316
        %v1470 = vpop.f32.mrf.mxu0
        %v1471 = vadd.f32 0.0, %v1470
        %v1472 = vpop.f32.mrf.mxu0
        %1473 = vmatprep.mubr.f32.mxu0 0.0
        %1474 = vmatmul.mubr.f32.gmra.mxu0 %v1317
        %v1475 = vpop.f32.mrf.mxu0
        %v1476 = vadd.f32 0.0, %v1475
        %v1477 = vpop.f32.mrf.mxu0
        %1478 = vmatprep.mubr.f32.mxu0 0.0
        %1479 = vmatmul.mubr.f32.gmra.mxu0 %v1318
        %v1480 = vpop.f32.mrf.mxu0
        %v1481 = vadd.f32 0.0, %v1480
        %v1482 = vpop.f32.mrf.mxu0
        %1483 = vmatprep.mubr.f32.mxu0 0.0
        %1484 = vmatmul.mubr.f32.gmra.mxu0 %v1319
        %v1485 = vpop.f32.mrf.mxu0
        %v1486 = vadd.f32 0.0, %v1485
        %v1487 = vpop.f32.mrf.mxu0
        %1488 = vmatprep.mubr.f32.mxu0 0.0
        %1489 = vmatmul.mubr.f32.gmra.mxu0 %v1320
        %v1490 = vpop.f32.mrf.mxu0
        %v1491 = vadd.f32 0.0, %v1490
        %v1492 = vpop.f32.mrf.mxu0
        %1493 = vmatprep.mubr.f32.mxu0 0.0
        %1494 = vmatmul.mubr.f32.gmra.mxu0 %v1321
        %v1495 = vpop.f32.mrf.mxu0
        %v1496 = vadd.f32 0.0, %v1495
        %v1497 = vpop.f32.mrf.mxu0
        %1498 = vmatprep.mubr.f32.mxu0 0.0
        %1499 = vmatmul.mubr.f32.gmra.mxu0 %v1322
        %v1500 = vpop.f32.mrf.mxu0
        %v1501 = vadd.f32 0.0, %v1500
        %v1502 = vpop.f32.mrf.mxu0
        %1503 = vmatprep.mubr.f32.mxu0 0.0
        %1504 = vmatmul.mubr.f32.gmra.mxu0 %v1323
        %v1505 = vpop.f32.mrf.mxu0
        %v1506 = vadd.f32 0.0, %v1505
        %v1507 = vpop.f32.mrf.mxu0
        %1508 = vmatprep.mubr.f32.mxu0 0.0
        %1509 = vmatmul.mubr.f32.gmra.mxu0 %v1324
        %v1510 = vpop.f32.mrf.mxu0
        %v1511 = vadd.f32 0.0, %v1510
        %v1512 = vpop.f32.mrf.mxu0
        %1513 = vmatprep.mubr.f32.mxu0 0.0
        %1514 = vmatmul.mubr.f32.gmra.mxu0 %v1325
        %v1515 = vpop.f32.mrf.mxu0
        %v1516 = vadd.f32 0.0, %v1515
        %v1517 = vpop.f32.mrf.mxu0
        %1518 = vmatprep.mubr.f32.mxu0 0.0
        %1519 = vmatmul.mubr.f32.gmra.mxu0 %v1326
        %v1520 = vpop.f32.mrf.mxu0
        %v1521 = vadd.f32 0.0, %v1520
        %v1522 = vpop.f32.mrf.mxu0
        %1523 = vmatprep.mubr.f32.mxu0 0.0
        %1524 = vmatmul.mubr.f32.gmra.mxu0 %v1327
        %v1525 = vpop.f32.mrf.mxu0
        %v1526 = vadd.f32 0.0, %v1525
        %v1527 = vpop.f32.mrf.mxu0
        %1528 = vmatprep.mubr.f32.mxu0 0.0
        %1529 = vmatmul.mubr.f32.gmra.mxu0 %v1328
        %v1530 = vpop.f32.mrf.mxu0
        %v1531 = vadd.f32 0.0, %v1530
        %v1532 = vpop.f32.mrf.mxu0
        %1533 = vmatprep.mubr.f32.mxu0 0.0
        %1534 = vmatmul.mubr.f32.gmra.mxu0 %v1329
        %v1535 = vpop.f32.mrf.mxu0
        %v1536 = vadd.f32 0.0, %v1535
        %v1537 = vpop.f32.mrf.mxu0
        %1538 = vmatprep.mubr.f32.mxu0 0.0
        %1539 = vmatmul.mubr.f32.gmra.mxu0 %v1330
        %v1540 = vpop.f32.mrf.mxu0
        %v1541 = vadd.f32 0.0, %v1540
        %v1542 = vpop.f32.mrf.mxu0
        %1543 = vmatprep.mubr.f32.mxu0 0.0
        %1544 = vmatmul.mubr.f32.gmra.mxu0 %v1331
        %v1545 = vpop.f32.mrf.mxu0
        %v1546 = vadd.f32 0.0, %v1545
        %v1547 = vpop.f32.mrf.mxu0
        %1548 = vmatprep.mubr.f32.mxu0 0.0
        %1549 = vmatmul.mubr.f32.gmra.mxu0 %v1332
        %v1550 = vpop.f32.mrf.mxu0
        %v1551 = vadd.f32 0.0, %v1550
        %v1552 = vpop.f32.mrf.mxu0
        %1553 = vmatprep.mubr.f32.mxu0 0.0
        %1554 = vmatmul.mubr.f32.gmra.mxu0 %v1333
        %v1555 = vpop.f32.mrf.mxu0
        %v1556 = vadd.f32 0.0, %v1555
        %v1557 = vpop.f32.mrf.mxu0
        %1558 = vdwg.mxu0
        %1559 = vst [vmem:[%s308] sm:$0xff] %v1401
        %1560 = vst [vmem:[%s308 + $0x8] sm:$0xff] %v1406
        %1561 = vst [vmem:[%s308 + $0x10] sm:$0xff] %v1411
        %1562 = vst [vmem:[%s308 + $0x18] sm:$0xff] %v1416
        %1563 = vst [vmem:[%s308 + $0x20] sm:$0xff] %v1421
        %1564 = vst [vmem:[%s308 + $0x28] sm:$0xff] %v1426
        %1565 = vst [vmem:[%s308 + $0x30] sm:$0xff] %v1431
        %1566 = vst [vmem:[%s308 + $0x38] sm:$0xff] %v1436
        %1567 = vst [vmem:[%s308 + $0x40] sm:$0xff] %v1441
        %1568 = vst [vmem:[%s308 + $0x48] sm:$0xff] %v1446
        %1569 = vst [vmem:[%s308 + $0x50] sm:$0xff] %v1451
        %1570 = vst [vmem:[%s308 + $0x58] sm:$0xff] %v1456
        %1571 = vst [vmem:[%s308 + $0x60] sm:$0xff] %v1461
        %1572 = vst [vmem:[%s308 + $0x68] sm:$0xff] %v1466
        %1573 = vst [vmem:[%s308 + $0x70] sm:$0xff] %v1471
        %1574 = vst [vmem:[%s308 + $0x78] sm:$0xff] %v1476
        %1575 = vst [vmem:[%s308 + $0x80] sm:$0xff] %v1481
        %1576 = vst [vmem:[%s308 + $0x88] sm:$0xff] %v1486
        %1577 = vst [vmem:[%s308 + $0x90] sm:$0xff] %v1491
        %1578 = vst [vmem:[%s308 + $0x98] sm:$0xff] %v1496
        %1579 = vst [vmem:[%s308 + $0xa0] sm:$0xff] %v1501
        %1580 = vst [vmem:[%s308 + $0xa8] sm:$0xff] %v1506
        %1581 = vst [vmem:[%s308 + $0xb0] sm:$0xff] %v1511
        %1582 = vst [vmem:[%s308 + $0xb8] sm:$0xff] %v1516
        %1583 = vst [vmem:[%s308 + $0xc0] sm:$0xff] %v1521
        %1584 = vst [vmem:[%s308 + $0xc8] sm:$0xff] %v1526
        %1585 = vst [vmem:[%s308 + $0xd0] sm:$0xff] %v1531
        %1586 = vst [vmem:[%s308 + $0xd8] sm:$0xff] %v1536
        %1587 = vst [vmem:[%s308 + $0xe0] sm:$0xff] %v1541
        %1588 = vst [vmem:[%s308 + $0xe8] sm:$0xff] %v1546
        %1589 = vst [vmem:[%s308 + $0xf0] sm:$0xff] %v1551
        %1590 = vst [vmem:[%s308 + $0xf8] sm:$0xff] %v1556
        %v1591 = vcvt.s32.f32 %v661
        %1592 = vmatprep.subr.mxu0 0.0
        %1593 = vmatpush1.xpose.msra.mxu0 %v1317
        %1594 = vmatprep.subr.mxu0 0.0
        %1595 = vmatpush1.xpose.msra.mxu0 %v1316
        %1596 = vmatprep.subr.mxu0 0.0
        %1597 = vmatpush1.xpose.msra.mxu0 %v1315
        %1598 = vmatprep.subr.mxu0 0.0
        %1599 = vmatpush1.xpose.msra.mxu0 %v1314
        %1600 = vmatprep.subr.mxu0 0.0
        %1601 = vmatpush1.xpose.msra.mxu0 %v1313
        %1602 = vmatprep.subr.mxu0 0.0
        %1603 = vmatpush1.xpose.msra.mxu0 %v1312
        %1604 = vmatprep.subr.mxu0 0.0
        %1605 = vmatpush1.xpose.msra.mxu0 %v1311
        %1606 = vmatprep.subr.mxu0 0.0
        %1607 = vmatpush1.xpose.msra.mxu0 %v1310
        %1608 = vmatprep.subr.mxu0 0.0
        %1609 = vmatpush1.xpose.msra.mxu0 %v1309
        %1610 = vmatprep.subr.mxu0 0.0
        %1611 = vmatpush1.xpose.msra.mxu0 %v1308
        %1612 = vmatprep.subr.mxu0 0.0
        %1613 = vmatpush1.xpose.msra.mxu0 %v1307
        %1614 = vmatprep.subr.mxu0 0.0
        %1615 = vmatpush1.xpose.msra.mxu0 %v1306
        %1616 = vmatprep.subr.mxu0 0.0
        %1617 = vmatpush1.xpose.msra.mxu0 %v1305
        %1618 = vmatprep.subr.mxu0 0.0
        %1619 = vmatpush1.xpose.msra.mxu0 %v1304
        %1620 = vmatprep.subr.mxu0 0.0
        %1621 = vmatpush1.xpose.msra.mxu0 %v1303
        %1622 = vmatprep.subr.mxu0 0.0
        %1623 = vmatpush1.xpose.msra.mxu0 %v1302
        %1624 = vmatprep.subr.mxu0 0.0
        %1625 = vmatpush2.xpose.msra.mxu0 %v1333
        %1626 = vmatprep.subr.mxu0 0.0
        %1627 = vmatpush2.xpose.msra.mxu0 %v1332
        %1628 = vmatprep.subr.mxu0 0.0
        %1629 = vmatpush2.xpose.msra.mxu0 %v1331
        %1630 = vmatprep.subr.mxu0 0.0
        %1631 = vmatpush2.xpose.msra.mxu0 %v1330
        %1632 = vmatprep.subr.mxu0 0.0
        %1633 = vmatpush2.xpose.msra.mxu0 %v1329
        %1634 = vmatprep.subr.mxu0 0.0
        %1635 = vmatpush2.xpose.msra.mxu0 %v1328
        %1636 = vmatprep.subr.mxu0 0.0
        %1637 = vmatpush2.xpose.msra.mxu0 %v1327
        %1638 = vmatprep.subr.mxu0 0.0
        %1639 = vmatpush2.xpose.msra.mxu0 %v1326
        %1640 = vmatprep.subr.mxu0 0.0
        %1641 = vmatpush2.xpose.msra.mxu0 %v1325
        %1642 = vmatprep.subr.mxu0 0.0
        %1643 = vmatpush2.xpose.msra.mxu0 %v1324
        %1644 = vmatprep.subr.mxu0 0.0
        %1645 = vmatpush2.xpose.msra.mxu0 %v1323
        %1646 = vmatprep.subr.mxu0 0.0
        %1647 = vmatpush2.xpose.msra.mxu0 %v1322
        %1648 = vmatprep.subr.mxu0 0.0
        %1649 = vmatpush2.xpose.msra.mxu0 %v1321
        %1650 = vmatprep.subr.mxu0 0.0
        %1651 = vmatpush2.xpose.msra.mxu0 %v1320
        %1652 = vmatprep.subr.mxu0 0.0
        %1653 = vmatpush2.xpose.msra.mxu0 %v1319
        %1654 = vmatprep.subr.mxu0 0.0
        %1655 = vmatpush2.xpose.msra.mxu0 %v1318
        %1656 = vmatprep.mubr.f32.mxu0 0.0
        %1657 = vmatmul.mubr.f32.gmra.mxu0 %v1591
        %v1658 = vpop.f32.mrf.mxu0
        %v1659 = vadd.f32 0.0, %v1658
        %v1660 = vpop.f32.mrf.mxu0
        %v1661 = vadd.f32 0.0, %v1660
        %1662 = vdwg.mxu0
        %v1663 = vcvt.f32.s32.to.zero.pseudo %v1659
        %v1664 = vcvt.f32.s32.to.zero.pseudo %v1661
        %v1665 = vcombine.low %v1663, %v1664
        %v1667 = vunpack.c.l.s4 1966171168
        %v1668 = vunpack.c.0.s8 %v1667
        %v1669 = vlaneseq
        %v1670 = vshrl.u32 %v1669, 7
        %v1671 = vsub.s32 %v1668, %v1670
        %v1672 = vrot.slane %v1665, %v1671
        %v1674 = vunpack.c.l.s4 1966171168
        %v1675 = vunpack.c.0.s8 %v1674
        %v1676 = vlaneseq
        %v1677 = vshrl.u32 %v1676, 7
        %v1678 = vsub.s32 %v1675, %v1677
        %v1679 = vrot.slane %v1672, %v1678
        %v1680 = vlaneseq
        %vm1681 = vcmp.ge.s32.totalorder %v1680, 0
        %vm1682 = vcmp.lt.s32.totalorder %v1680, 256
        %vm1683 = vmand %vm1681, %vm1682
        %1684 = vst.msk [vmem:[%s315] sm:$0x3] %vm1683, %v1679
        %v1685 = vsub.f32 %v1401, %v332
        %v1686 = vsub.f32 %v1406, %v333
        %v1687 = vsub.f32 %v1411, %v334
        %v1688 = vsub.f32 %v1416, %v335
        %v1689 = vsub.f32 %v1421, %v336
        %v1690 = vsub.f32 %v1426, %v337
        %v1691 = vsub.f32 %v1431, %v338
        %v1692 = vsub.f32 %v1436, %v339
        %v1693 = vsub.f32 %v1441, %v340
        %v1694 = vsub.f32 %v1446, %v341
        %v1695 = vsub.f32 %v1451, %v342
        %v1696 = vsub.f32 %v1456, %v343
        %v1697 = vsub.f32 %v1461, %v344
        %v1698 = vsub.f32 %v1466, %v345
        %v1699 = vsub.f32 %v1471, %v346
        %v1700 = vsub.f32 %v1476, %v347
        %v1701 = vsub.f32 %v1481, %v348
        %v1702 = vsub.f32 %v1486, %v349
        %v1703 = vsub.f32 %v1491, %v350
        %v1704 = vsub.f32 %v1496, %v351
        %v1705 = vsub.f32 %v1501, %v352
        %v1706 = vsub.f32 %v1506, %v353
        %v1707 = vsub.f32 %v1511, %v354
        %v1708 = vsub.f32 %v1516, %v355
        %v1709 = vsub.f32 %v1521, %v356
        %v1710 = vsub.f32 %v1526, %v357
        %v1711 = vsub.f32 %v1531, %v358
        %v1712 = vsub.f32 %v1536, %v359
        %v1713 = vsub.f32 %v1541, %v360
        %v1714 = vsub.f32 %v1546, %v361
        %v1715 = vsub.f32 %v1551, %v362
        %v1716 = vsub.f32 %v1556, %v363
        %v1717 = vmul.f32 %v1685, %v1685
        %v1718 = vmul.f32 %v1686, %v1686
        %v1719 = vmul.f32 %v1687, %v1687
        %v1720 = vmul.f32 %v1688, %v1688
        %v1721 = vmul.f32 %v1689, %v1689
        %v1722 = vmul.f32 %v1690, %v1690
        %v1723 = vmul.f32 %v1691, %v1691
        %v1724 = vmul.f32 %v1692, %v1692
        %v1725 = vmul.f32 %v1693, %v1693
        %v1726 = vmul.f32 %v1694, %v1694
        %v1727 = vmul.f32 %v1695, %v1695
        %v1728 = vmul.f32 %v1696, %v1696
        %v1729 = vmul.f32 %v1697, %v1697
        %v1730 = vmul.f32 %v1698, %v1698
        %v1731 = vmul.f32 %v1699, %v1699
        %v1732 = vmul.f32 %v1700, %v1700
        %v1733 = vmul.f32 %v1701, %v1701
        %v1734 = vmul.f32 %v1702, %v1702
        %v1735 = vmul.f32 %v1703, %v1703
        %v1736 = vmul.f32 %v1704, %v1704
        %v1737 = vmul.f32 %v1705, %v1705
        %v1738 = vmul.f32 %v1706, %v1706
        %v1739 = vmul.f32 %v1707, %v1707
        %v1740 = vmul.f32 %v1708, %v1708
        %v1741 = vmul.f32 %v1709, %v1709
        %v1742 = vmul.f32 %v1710, %v1710
        %v1743 = vmul.f32 %v1711, %v1711
        %v1744 = vmul.f32 %v1712, %v1712
        %v1745 = vmul.f32 %v1713, %v1713
        %v1746 = vmul.f32 %v1714, %v1714
        %v1747 = vmul.f32 %v1715, %v1715
        %v1748 = vmul.f32 %v1716, %v1716
        %s1749 = smul.u32 %s28, 256
        %v1750 = vlaneseq
        %v1751 = vshrl.u32 %v1750, 7
        %v1752 = vadd.s32 %v1751, 8
        %v1753 = vadd.s32 %v1751, 16
        %v1754 = vadd.s32 %v1751, 24
        %v1755 = vadd.s32 %v1751, 32
        %v1756 = vadd.s32 %v1751, 40
        %v1757 = vadd.s32 %v1751, 48
        %v1758 = vadd.s32 %v1751, 56
        %v1759 = vadd.s32 %v1751, 64
        %v1760 = vadd.s32 %v1751, 72
        %v1761 = vadd.s32 %v1751, 80
        %v1762 = vadd.s32 %v1751, 88
        %v1763 = vadd.s32 %v1751, 96
        %v1764 = vadd.s32 %v1751, 104
        %v1765 = vadd.s32 %v1751, 112
        %v1766 = vadd.s32 %v1751, 120
        %v1767 = vadd.s32 %v1751, 128
        %v1768 = vadd.s32 %v1751, 136
        %v1769 = vadd.s32 %v1751, 144
        %v1770 = vadd.s32 %v1751, 152
        %v1771 = vadd.s32 %v1751, 160
        %v1772 = vadd.s32 %v1751, 168
        %v1773 = vadd.s32 %v1751, 176
        %v1774 = vadd.s32 %v1751, 184
        %v1775 = vadd.s32 %v1751, 192
        %v1776 = vadd.s32 %v1751, 200
        %v1777 = vadd.s32 %v1751, 208
        %v1778 = vadd.s32 %v1751, 216
        %v1779 = vadd.s32 %v1751, 224
        %v1780 = vadd.s32 %v1751, 232
        %v1781 = vadd.s32 %v1751, 240
        %v1782 = vadd.s32 %v1751, 248
        %v1783 = vstv %s1749
        %v1784 = vadd.s32 %v1783, %v1751
        %v1785 = vadd.s32 %v1783, %v1752
        %v1786 = vadd.s32 %v1783, %v1753
        %v1787 = vadd.s32 %v1783, %v1754
        %v1788 = vadd.s32 %v1783, %v1755
        %v1789 = vadd.s32 %v1783, %v1756
        %v1790 = vadd.s32 %v1783, %v1757
        %v1791 = vadd.s32 %v1783, %v1758
        %v1792 = vadd.s32 %v1783, %v1759
        %v1793 = vadd.s32 %v1783, %v1760
        %v1794 = vadd.s32 %v1783, %v1761
        %v1795 = vadd.s32 %v1783, %v1762
        %v1796 = vadd.s32 %v1783, %v1763
        %v1797 = vadd.s32 %v1783, %v1764
        %v1798 = vadd.s32 %v1783, %v1765
        %v1799 = vadd.s32 %v1783, %v1766
        %v1800 = vadd.s32 %v1783, %v1767
        %v1801 = vadd.s32 %v1783, %v1768
        %v1802 = vadd.s32 %v1783, %v1769
        %v1803 = vadd.s32 %v1783, %v1770
        %v1804 = vadd.s32 %v1783, %v1771
        %v1805 = vadd.s32 %v1783, %v1772
        %v1806 = vadd.s32 %v1783, %v1773
        %v1807 = vadd.s32 %v1783, %v1774
        %v1808 = vadd.s32 %v1783, %v1775
        %v1809 = vadd.s32 %v1783, %v1776
        %v1810 = vadd.s32 %v1783, %v1777
        %v1811 = vadd.s32 %v1783, %v1778
        %v1812 = vadd.s32 %v1783, %v1779
        %v1813 = vadd.s32 %v1783, %v1780
        %v1814 = vadd.s32 %v1783, %v1781
        %v1815 = vadd.s32 %v1783, %v1782
        %vm1816 = vcmp.lt.s32.totalorder %v1784, 400
        %vm1817 = vcmp.lt.s32.totalorder %v1785, 400
        %vm1818 = vcmp.lt.s32.totalorder %v1786, 400
        %vm1819 = vcmp.lt.s32.totalorder %v1787, 400
        %vm1820 = vcmp.lt.s32.totalorder %v1788, 400
        %vm1821 = vcmp.lt.s32.totalorder %v1789, 400
        %vm1822 = vcmp.lt.s32.totalorder %v1790, 400
        %vm1823 = vcmp.lt.s32.totalorder %v1791, 400
        %vm1824 = vcmp.lt.s32.totalorder %v1792, 400
        %vm1825 = vcmp.lt.s32.totalorder %v1793, 400
        %vm1826 = vcmp.lt.s32.totalorder %v1794, 400
        %vm1827 = vcmp.lt.s32.totalorder %v1795, 400
        %vm1828 = vcmp.lt.s32.totalorder %v1796, 400
        %vm1829 = vcmp.lt.s32.totalorder %v1797, 400
        %vm1830 = vcmp.lt.s32.totalorder %v1798, 400
        %vm1831 = vcmp.lt.s32.totalorder %v1799, 400
        %vm1832 = vcmp.lt.s32.totalorder %v1800, 400
        %vm1833 = vcmp.lt.s32.totalorder %v1801, 400
        %vm1834 = vcmp.lt.s32.totalorder %v1802, 400
        %vm1835 = vcmp.lt.s32.totalorder %v1803, 400
        %vm1836 = vcmp.lt.s32.totalorder %v1804, 400
        %vm1837 = vcmp.lt.s32.totalorder %v1805, 400
        %vm1838 = vcmp.lt.s32.totalorder %v1806, 400
        %vm1839 = vcmp.lt.s32.totalorder %v1807, 400
        %vm1840 = vcmp.lt.s32.totalorder %v1808, 400
        %vm1841 = vcmp.lt.s32.totalorder %v1809, 400
        %vm1842 = vcmp.lt.s32.totalorder %v1810, 400
        %vm1843 = vcmp.lt.s32.totalorder %v1811, 400
        %vm1844 = vcmp.lt.s32.totalorder %v1812, 400
        %vm1845 = vcmp.lt.s32.totalorder %v1813, 400
        %vm1846 = vcmp.lt.s32.totalorder %v1814, 400
        %vm1847 = vcmp.lt.s32.totalorder %v1815, 400
        %v1848 = vsel %vm1816, 1, 0
        %v1849 = vsel %vm1817, 1, 0
        %v1850 = vsel %vm1818, 1, 0
        %v1851 = vsel %vm1819, 1, 0
        %v1852 = vsel %vm1820, 1, 0
        %v1853 = vsel %vm1821, 1, 0
        %v1854 = vsel %vm1822, 1, 0
        %v1855 = vsel %vm1823, 1, 0
        %v1856 = vsel %vm1824, 1, 0
        %v1857 = vsel %vm1825, 1, 0
        %v1858 = vsel %vm1826, 1, 0
        %v1859 = vsel %vm1827, 1, 0
        %v1860 = vsel %vm1828, 1, 0
        %v1861 = vsel %vm1829, 1, 0
        %v1862 = vsel %vm1830, 1, 0
        %v1863 = vsel %vm1831, 1, 0
        %v1864 = vsel %vm1832, 1, 0
        %v1865 = vsel %vm1833, 1, 0
        %v1866 = vsel %vm1834, 1, 0
        %v1867 = vsel %vm1835, 1, 0
        %v1868 = vsel %vm1836, 1, 0
        %v1869 = vsel %vm1837, 1, 0
        %v1870 = vsel %vm1838, 1, 0
        %v1871 = vsel %vm1839, 1, 0
        %v1872 = vsel %vm1840, 1, 0
        %v1873 = vsel %vm1841, 1, 0
        %v1874 = vsel %vm1842, 1, 0
        %v1875 = vsel %vm1843, 1, 0
        %v1876 = vsel %vm1844, 1, 0
        %v1877 = vsel %vm1845, 1, 0
        %v1878 = vsel %vm1846, 1, 0
        %v1879 = vsel %vm1847, 1, 0
        %vm1880 = vcmp.eq.s32.totalorder %v1848, 1
        %vm1881 = vcmp.eq.s32.totalorder %v1849, 1
        %vm1882 = vcmp.eq.s32.totalorder %v1850, 1
        %vm1883 = vcmp.eq.s32.totalorder %v1851, 1
        %vm1884 = vcmp.eq.s32.totalorder %v1852, 1
        %vm1885 = vcmp.eq.s32.totalorder %v1853, 1
        %vm1886 = vcmp.eq.s32.totalorder %v1854, 1
        %vm1887 = vcmp.eq.s32.totalorder %v1855, 1
        %vm1888 = vcmp.eq.s32.totalorder %v1856, 1
        %vm1889 = vcmp.eq.s32.totalorder %v1857, 1
        %vm1890 = vcmp.eq.s32.totalorder %v1858, 1
        %vm1891 = vcmp.eq.s32.totalorder %v1859, 1
        %vm1892 = vcmp.eq.s32.totalorder %v1860, 1
        %vm1893 = vcmp.eq.s32.totalorder %v1861, 1
        %vm1894 = vcmp.eq.s32.totalorder %v1862, 1
        %vm1895 = vcmp.eq.s32.totalorder %v1863, 1
        %vm1896 = vcmp.eq.s32.totalorder %v1864, 1
        %vm1897 = vcmp.eq.s32.totalorder %v1865, 1
        %vm1898 = vcmp.eq.s32.totalorder %v1866, 1
        %vm1899 = vcmp.eq.s32.totalorder %v1867, 1
        %vm1900 = vcmp.eq.s32.totalorder %v1868, 1
        %vm1901 = vcmp.eq.s32.totalorder %v1869, 1
        %vm1902 = vcmp.eq.s32.totalorder %v1870, 1
        %vm1903 = vcmp.eq.s32.totalorder %v1871, 1
        %vm1904 = vcmp.eq.s32.totalorder %v1872, 1
        %vm1905 = vcmp.eq.s32.totalorder %v1873, 1
        %vm1906 = vcmp.eq.s32.totalorder %v1874, 1
        %vm1907 = vcmp.eq.s32.totalorder %v1875, 1
        %vm1908 = vcmp.eq.s32.totalorder %v1876, 1
        %vm1909 = vcmp.eq.s32.totalorder %v1877, 1
        %vm1910 = vcmp.eq.s32.totalorder %v1878, 1
        %vm1911 = vcmp.eq.s32.totalorder %v1879, 1
        %v1912 = vsel %vm1880, %v1717, 0.0
        %v1913 = vsel %vm1881, %v1718, 0.0
        %v1914 = vsel %vm1882, %v1719, 0.0
        %v1915 = vsel %vm1883, %v1720, 0.0
        %v1916 = vsel %vm1884, %v1721, 0.0
        %v1917 = vsel %vm1885, %v1722, 0.0
        %v1918 = vsel %vm1886, %v1723, 0.0
        %v1919 = vsel %vm1887, %v1724, 0.0
        %v1920 = vsel %vm1888, %v1725, 0.0
        %v1921 = vsel %vm1889, %v1726, 0.0
        %v1922 = vsel %vm1890, %v1727, 0.0
        %v1923 = vsel %vm1891, %v1728, 0.0
        %v1924 = vsel %vm1892, %v1729, 0.0
        %v1925 = vsel %vm1893, %v1730, 0.0
        %v1926 = vsel %vm1894, %v1731, 0.0
        %v1927 = vsel %vm1895, %v1732, 0.0
        %v1928 = vsel %vm1896, %v1733, 0.0
        %v1929 = vsel %vm1897, %v1734, 0.0
        %v1930 = vsel %vm1898, %v1735, 0.0
        %v1931 = vsel %vm1899, %v1736, 0.0
        %v1932 = vsel %vm1900, %v1737, 0.0
        %v1933 = vsel %vm1901, %v1738, 0.0
        %v1934 = vsel %vm1902, %v1739, 0.0
        %v1935 = vsel %vm1903, %v1740, 0.0
        %v1936 = vsel %vm1904, %v1741, 0.0
        %v1937 = vsel %vm1905, %v1742, 0.0
        %v1938 = vsel %vm1906, %v1743, 0.0
        %v1939 = vsel %vm1907, %v1744, 0.0
        %v1940 = vsel %vm1908, %v1745, 0.0
        %v1941 = vsel %vm1909, %v1746, 0.0
        %v1942 = vsel %vm1910, %v1747, 0.0
        %v1943 = vsel %vm1911, %v1748, 0.0
        %v1944 = vadd.f32 %v1912, %v1913
        %v1945 = vadd.f32 %v1944, %v1914
        %v1946 = vadd.f32 %v1945, %v1915
        %v1947 = vadd.f32 %v1946, %v1916
        %v1948 = vadd.f32 %v1947, %v1917
        %v1949 = vadd.f32 %v1948, %v1918
        %v1950 = vadd.f32 %v1949, %v1919
        %v1951 = vadd.f32 %v1950, %v1920
        %v1952 = vadd.f32 %v1951, %v1921
        %v1953 = vadd.f32 %v1952, %v1922
        %v1954 = vadd.f32 %v1953, %v1923
        %v1955 = vadd.f32 %v1954, %v1924
        %v1956 = vadd.f32 %v1955, %v1925
        %v1957 = vadd.f32 %v1956, %v1926
        %v1958 = vadd.f32 %v1957, %v1927
        %v1959 = vadd.f32 %v1958, %v1928
        %v1960 = vadd.f32 %v1959, %v1929
        %v1961 = vadd.f32 %v1960, %v1930
        %v1962 = vadd.f32 %v1961, %v1931
        %v1963 = vadd.f32 %v1962, %v1932
        %v1964 = vadd.f32 %v1963, %v1933
        %v1965 = vadd.f32 %v1964, %v1934
        %v1966 = vadd.f32 %v1965, %v1935
        %v1967 = vadd.f32 %v1966, %v1936
        %v1968 = vadd.f32 %v1967, %v1937
        %v1969 = vadd.f32 %v1968, %v1938
        %v1970 = vadd.f32 %v1969, %v1939
        %v1971 = vadd.f32 %v1970, %v1940
        %v1972 = vadd.f32 %v1971, %v1941
        %v1973 = vadd.f32 %v1972, %v1942
        %v1974 = vadd.f32 %v1973, %v1943
        %v1975 = vrot.slane %v1974, 4
        %v1976 = vadd.f32 %v1974, %v1975
        %v1977 = vrot.slane %v1976, 2
        %v1978 = vadd.f32 %v1976, %v1977
        %v1979 = vrot.slane %v1978, 1
        %v1980 = vadd.f32 %v1978, %v1979
        %1981 = vst [vmem:[%s321] sm:$0x1] %v1980
        %s1982 = sand.u32 %s125, 1
        %s1983 = scalar_lea.sflag [#allocation4], %s1982
        %s1984 = sand.u32 %s125, 1
        %s1985 = smul.addr %s1984, 256
        %s1986 = scalar_lea.vmem [#allocation8], %s1985
        %s1987 = sand.u32 %s28, 1
        %s1988 = scalar_lea.sflag [#allocation10], %s1987
        %s1989 = sand.u32 %s151, 1
        %s1990 = smul.addr %s1989, 2
        %s1991 = scalar_lea.vmem [#allocation9], %s1990
        %s1992 = sand.u32 %s28, 1
        %s1993 = scalar_lea.sflag [#allocation10], %s1992
        %s1994 = sand.u32 %s177, 1
        %s1995 = scalar_lea.vmem [#allocation11], %s1994
        // Predicated region
        $region49: #{tpu_custom_call.1} parent=35 // pred_check
          %p1996 = pneg %p135
        $region50: #{tpu_custom_call.1} parent=35 // pred_check_branch
          %1998 = sbr.rel (%p1996) target = $region52
        $region51: #{tpu_custom_call.1} parent=35 // pred_region
          %s1999 = smul.u32 32, %s28
          %s2000 = ssub.s32 50, %s1999
          %p2001 = scmp.lt.s32.totalorder %s2000, 32
          %s2002 = scalar_select %p2001, %s2000, 32
          %s2003 = smul.u32 128, %s2002
          %s2005 = ssub.s32 4096, %s2003
          %2006 = vsyncadd %s1983, %s2005
          %p2007 = scmp.ne.s32.totalorder 0, %s2003
          %s2008 = smul.addr %s1999, 128
          %s2009 = scalar_lea.hbm %s4, %s2008
          %s2010 = smul.u32 8, %s2002
          %s2011 = sshll.u32 %s1986, 4
          %s2012 = int_to_ptr.vmem [resolvable:$true] %s2011
          %s2013 = sshll.u32 %s2010, 4
          %2017 = dma.vmem_to_hbm [thread:$0]  (%p2007), %s2012, %s2013, %s2009, %s1983, 128, 128, 8
        $region52: #{tpu_custom_call.1} parent=35 // pred_fallthru
          _
        // Predicated region
        $region53: #{tpu_custom_call.1} parent=35 // pred_check
          %p2018 = pneg %p161
        $region54: #{tpu_custom_call.1} parent=35 // pred_check_branch
          %2020 = sbr.rel (%p2018) target = $region56
        $region55: #{tpu_custom_call.1} parent=35 // pred_region
          %s2022 = ssub.s32 32, 32
          %2023 = vsyncadd %s1988, %s2022
          %s2024 = smul.addr %s28, 2
          %s2025 = smul.addr %s2024, 16
          %s2026 = scalar_lea.hbm %s5, %s2025
          %s2028 = sshll.u32 %s1991, 4
          %s2029 = int_to_ptr.vmem [resolvable:$true] %s2028
          %2031 = dma.vmem_to_hbm [thread:$0]  %s2029, 32, %s2026, %s1988
        $region56: #{tpu_custom_call.1} parent=35 // pred_fallthru
          _
        // Predicated region
        $region57: #{tpu_custom_call.1} parent=35 // pred_check
          %p2032 = pneg %p187
        $region58: #{tpu_custom_call.1} parent=35 // pred_check_branch
          %2034 = sbr.rel (%p2032) target = $region60
        $region59: #{tpu_custom_call.1} parent=35 // pred_region
          %s2036 = ssub.s32 16, 16
          %2037 = vsyncadd %s1993, %s2036
          %s2038 = smul.addr %s28, 16
          %s2039 = scalar_lea.hbm %s6, %s2038
          %s2041 = sshll.u32 %s1995, 4
          %s2042 = int_to_ptr.vmem [resolvable:$true] %s2041
          %2044 = dma.vmem_to_hbm [thread:$0]  %s2042, 16, %s2039, %s1993
        $region60: #{tpu_custom_call.1} parent=35 // pred_fallthru
          _
      $region36: #{tpu_custom_call.1} parent=5 // pred_fallthru
        _
      %p2045 = scmp.le.s32.totalorder 2, %s23
      // Predicated region
      $region61: #{tpu_custom_call.1} parent=5 // pred_check
        %p2046 = pneg %p2045
      $region62: #{tpu_custom_call.1} parent=5 // pred_check_branch
        %2048 = sbr.rel (%p2046) target = $region64
      $region63: #{tpu_custom_call.1} parent=5 // pred_region
        %s2049 = ssub.s32 %s23, 2
        // Predicated region
        $region65: #{tpu_custom_call.1} parent=63 // pred_check
          %p2050 = pneg %p141
        $region66: #{tpu_custom_call.1} parent=63 // pred_check_branch
          %2052 = sbr.rel (%p2050) target = $region68
        $region67: #{tpu_custom_call.1} parent=63 // pred_region
          %s2053 = sand.u32 %s126, 1
          %s2054 = scalar_lea.sflag [#allocation4], %s2053
          %s2055 = sand.u32 %s126, 1
          %s2056 = smul.addr %s2055, 256
          %s2057 = scalar_lea.vmem [#allocation8], %s2056
          %2058 = dma.done %s2054, 4096
        $region68: #{tpu_custom_call.1} parent=63 // pred_fallthru
          _
        // Predicated region
        $region69: #{tpu_custom_call.1} parent=63 // pred_check
          %p2059 = pneg %p167
        $region70: #{tpu_custom_call.1} parent=63 // pred_check_branch
          %2061 = sbr.rel (%p2059) target = $region72
        $region71: #{tpu_custom_call.1} parent=63 // pred_region
          %s2062 = sand.u32 %s29, 1
          %s2063 = scalar_lea.sflag [#allocation10], %s2062
          %s2064 = sand.u32 %s152, 1
          %s2065 = smul.addr %s2064, 2
          %s2066 = scalar_lea.vmem [#allocation9], %s2065
          %2067 = dma.done %s2063, 32
        $region72: #{tpu_custom_call.1} parent=63 // pred_fallthru
          _
        // Predicated region
        $region73: #{tpu_custom_call.1} parent=63 // pred_check
          %p2068 = pneg %p193
        $region74: #{tpu_custom_call.1} parent=63 // pred_check_branch
          %2070 = sbr.rel (%p2068) target = $region76
        $region75: #{tpu_custom_call.1} parent=63 // pred_region
          %s2071 = sand.u32 %s29, 1
          %s2072 = scalar_lea.sflag [#allocation10], %s2071
          %s2073 = sand.u32 %s178, 1
          %s2074 = scalar_lea.vmem [#allocation11], %s2073
          %2075 = dma.done %s2072, 16
        $region76: #{tpu_custom_call.1} parent=63 // pred_fallthru
          _
      $region64: #{tpu_custom_call.1} parent=5 // pred_fallthru
        _
    $region6: #{tpu_custom_call.1} parent=1 // loop_footer
      %s27 = sadd.s32 1, %s23
    $region7: #{tpu_custom_call.1} parent=1 // loop_footer_branch
      %22 = sbr.rel target = $region3
    $region8: #{tpu_custom_call.1} parent=1 // loop_exit
      _
    %2076 = vsyncpa [#allocation3], 1
    %s2077 = scalar_lea.sflag [#allocation3], 1
    %2078 = vsyncpa %s2077, 1
    %2079 = vsyncpa [#allocation6], 1
    %2080 = vsyncpa [#allocation4], 1
    %s2081 = scalar_lea.sflag [#allocation4], 1
    %2082 = vsyncpa %s2081, 1
    %2083 = vsyncpa [#allocation10], 1
    %s2084 = scalar_lea.sflag [#allocation10], 1
    %2085 = vsyncpa %s2084, 1

</llo_original>
